<compile_context>
chip_gen: v5e
topology: v5e:2x2
jax: 0.10.0
libtpu: 0.0.40
codegen_flags: <defaults>
</compile_context>

<pallas_src>
import functools

import jax
import jax.numpy as jnp
from jax.experimental import pallas as pl
from jax.experimental.pallas import tpu as pltpu


# ----------------------------------------------------------------------------
# Pallas kernel: fused multi-head self-attention for one grid step
# ----------------------------------------------------------------------------
def attention_kernel(x_ref, wqkv_ref, wo_ref, bo_ref, mask_ref, o_ref, *, heads):
    """Fused MHSA on one (R, D) slab of rows (R = batch_block * P * N).

    x_ref:    (1, R, D)          activations (f32)
    wqkv_ref: (3*heads, D, dh)   bf16, Q block pre-scaled by 1/sqrt(dh)
    wo_ref:   (heads, dh, D)     bf16 output projection (per-head blocks)
    bo_ref:   (1, D)             f32 output projection bias
    mask_ref: (R, R)             f32 additive block-diagonal mask (0 / -1e30)
    o_ref:    (1, R, D)
    """
    R = x_ref.shape[1]
    D = x_ref.shape[2]

    # QKV projection: one batched MXU matmul over 3*heads leading-batch slabs.
    # x is broadcast along the batch axis (cheap replication, no relayout).
    x = x_ref[0].astype(jnp.bfloat16)                                # (R, D)
    xb = jnp.broadcast_to(x[None], (3 * heads, R, D))                # (3H, R, D)
    qkv = jnp.einsum('brd,bde->bre', xb, wqkv_ref[...],
                     preferred_element_type=jnp.float32)             # (3H, R, dh)

    q = qkv[0:heads]                                                 # (H, R, dh)
    k = qkv[heads:2 * heads]
    v = qkv[2 * heads:3 * heads]

    # Lane-dense per-head scores over all R tokens; the block-diagonal mask
    # keeps attention within each (batch, patch) group of N tokens.
    # f32 operands: with K=dh tiny the MXU is latency-bound anyway.
    scores = jnp.einsum('hrd,hsd->hrs', q, k,
                        preferred_element_type=jnp.float32)          # (H, R, R)
    scores = scores + mask_ref[...]

    # Numerically-stable softmax (f32); denominator via EUP approx reciprocal.
    scores = scores - jnp.max(scores, axis=-1, keepdims=True)
    e = jnp.exp(scores)
    attn = e * pl.reciprocal(jnp.sum(e, axis=-1, keepdims=True), approx=True)

    ctx = jnp.einsum('hrs,hsd->hrd', attn, v,
                     preferred_element_type=jnp.float32)             # (H, R, dh)

    # Output projection: per-head (dh, D) weight blocks, summed over heads.
    # Equivalent to concat(ctx_h) @ wo but needs no head-merge relayout.
    outh = jnp.einsum('hrd,hde->hre', ctx.astype(jnp.bfloat16), wo_ref[...],
                      preferred_element_type=jnp.float32)            # (H, R, D)
    out = jnp.sum(outh, axis=0) + bo_ref[...]                        # (R, D)

    o_ref[0] = out.astype(o_ref.dtype)


# ----------------------------------------------------------------------------
# Offline weight preparation (do once at model init)
# ----------------------------------------------------------------------------
def prepare_params(wqkv, wo, bo, heads, weight_dtype=jnp.bfloat16):
    """wqkv: (D, 3*inner), wo: (inner, D), bo: (1, D)  ->  kernel layouts."""
    D, three_inner = wqkv.shape
    inner = three_inner // 3
    assert inner % heads == 0
    dh = inner // heads
    scale = dh ** -0.5

    wq, wk, wv = jnp.split(wqkv, 3, axis=1)      # each (D, inner), head-major cols
    wq = wq * scale                              # fold 1/sqrt(dh) into Q

    def heads_first(w):                          # (D, inner) -> (heads, D, dh)
        return jnp.transpose(w.reshape(D, heads, dh), (1, 0, 2))

    wqkv3 = jnp.concatenate(
        [heads_first(wq), heads_first(wk), heads_first(wv)], axis=0
    ).astype(weight_dtype)                       # (3*heads, D, dh)
    wo3 = wo.reshape(heads, dh, D).astype(weight_dtype)   # (heads, dh, D)
    return wqkv3, wo3, bo.astype(jnp.float32)


def _block_diag_mask(rows, n):
    """Additive mask: 0 within each n-token group, -1e30 across groups."""
    g = jnp.arange(rows, dtype=jnp.int32) // n
    return jnp.where(g[:, None] == g[None, :], 0.0, -1e30).astype(jnp.float32)


def _grid_blocks(batch):
    """v7x (2 TensorCores/chip): grid over batch; v5e/v6e: fold batch into rows."""
    try:
        kind = jax.devices()[0].device_kind.lower()
    except Exception:
        return 1
    return batch if "v7" in kind else 1


# ----------------------------------------------------------------------------
# Wrapper
# ----------------------------------------------------------------------------
def attention(x, params, heads):
    """x: (B, P, N, D) -> (B, P, N, D). Single pallas_call."""
    wqkv3, wo3, bo = params
    B, P, N, D = x.shape
    dh = wqkv3.shape[-1]

    G = _grid_blocks(B)
    if B % G != 0:
        G = 1
    R = (B // G) * P * N                         # rows per grid step
    x2 = x.reshape(G, R, D)
    mask = _block_diag_mask(R, N)

    kernel = functools.partial(attention_kernel, heads=heads)
    out = pl.pallas_call(
        kernel,
        out_shape=jax.ShapeDtypeStruct((G, R, D), x.dtype),
        grid=(G,),
        in_specs=[
            pl.BlockSpec((1, R, D), lambda g: (g, 0, 0)),
            pl.BlockSpec((3 * heads, D, dh), lambda g: (0, 0, 0)),
            pl.BlockSpec((heads, dh, D), lambda g: (0, 0, 0)),
            pl.BlockSpec((1, D), lambda g: (0, 0)),
            pl.BlockSpec((R, R), lambda g: (0, 0)),
        ],
        out_specs=pl.BlockSpec((1, R, D), lambda g: (g, 0, 0)),
        compiler_params=pltpu.CompilerParams(
            dimension_semantics=("parallel",)),
    )(x2, wqkv3, wo3, bo, mask)
    return out.reshape(B, P, N, D)


# ----------------------------------------------------------------------------
# Pure-JAX reference (mirrors the PyTorch forward exactly) for validation
# ----------------------------------------------------------------------------
def attention_ref(x, wqkv, wo, bo, heads):
    b, p, n, d = x.shape
    inner = wo.shape[0]
    dh = inner // heads
    qkv = jnp.einsum('bpnd,de->bpne', x, wqkv)
    q, k, v = jnp.split(qkv, 3, axis=-1)

    def rsh(t):
        return jnp.swapaxes(t.reshape(b, p, n, heads, dh), 2, 3)

    q, k, v = rsh(q), rsh(k), rsh(v)
    dots = jnp.einsum('bphnd,bphmd->bphnm', q, k) * (dh ** -0.5)
    attn = jax.nn.softmax(dots, axis=-1)
    out = jnp.einsum('bphnm,bphmd->bphnd', attn, v)
    out = jnp.swapaxes(out, 2, 3).reshape(b, p, n, inner)
    return out @ wo + bo


# ----------------------------------------------------------------------------
if __name__ == "__main__":
    # MobileViT transformer shapes: x is (b, p, n, dim), heads=4, dim_head=8.
    B, P, N, D = 2, 4, 16, 32
    heads, dim_head = 4, 8
    inner = heads * dim_head

    key = jax.random.PRNGKey(0)
    kx, kq, ko, kb = jax.random.split(key, 4)
    x = jax.random.normal(kx, (B, P, N, D), jnp.float32)
    wqkv = jax.random.normal(kq, (D, 3 * inner), jnp.float32) * (D ** -0.5)
    wo = jax.random.normal(ko, (inner, D), jnp.float32) * (inner ** -0.5)
    bo = jax.random.normal(kb, (1, D), jnp.float32) * 0.05

    params = prepare_params(wqkv, wo, bo, heads)
    out = attention(x, params, heads)
    out = jax.block_until_ready(out)

    assert out.shape == (B, P, N, D), out.shape
    assert jnp.all(jnp.isfinite(out))

    # Validate against the f32 reference (kernel uses bf16 pre-cast weights for
    # the projections and an approx reciprocal in the softmax denominator).
    ref = attention_ref(x, wqkv, wo, bo, heads)
    max_err = float(jnp.max(jnp.abs(out - ref)))
    assert max_err < 1e-1, f"max abs error {max_err}"

    print("KERNEL_OK")
</pallas_src>

<mosaic_0001>
module attributes {stable_mosaic.version = 11 : i64} {
  func.func @attention_kernel(%arg0: i32, %arg1: memref<1x128x32xf32, #tpu.memory_space<vmem>>, %arg2: memref<12x32x8xbf16, #tpu.memory_space<vmem>>, %arg3: memref<4x8x32xbf16, #tpu.memory_space<vmem>>, %arg4: memref<1x32xf32, #tpu.memory_space<vmem>>, %arg5: memref<128x128xf32, #tpu.memory_space<vmem>>, %arg6: memref<1x128x32xf32, #tpu.memory_space<vmem>>) attributes {dimension_semantics = [#tpu.dimension_semantics<parallel>], iteration_bounds = array<i64: 1>, scalar_prefetch = 0 : i64, scratch_operands = 0 : i64, tpu.core_type = #tpu.core_type<tc>, window_params = [{transform_indices = @transform_0, window_bounds = array<i64: 1, 128, 32>}, {pipeline_mode = #tpu.pipeline_mode<synchronous>, transform_indices = @transform_1, window_bounds = array<i64: 12, 32, 8>}, {pipeline_mode = #tpu.pipeline_mode<synchronous>, transform_indices = @transform_2, window_bounds = array<i64: 4, 8, 32>}, {pipeline_mode = #tpu.pipeline_mode<synchronous>, transform_indices = @transform_3, window_bounds = array<i64: 1, 32>}, {pipeline_mode = #tpu.pipeline_mode<synchronous>, transform_indices = @transform_4, window_bounds = array<i64: 128, 128>}, {transform_indices = @transform_5, window_bounds = array<i64: 1, 128, 32>}]} {
    %c0 = arith.constant 0 : index
    %c0_0 = arith.constant 0 : index
    %c0_1 = arith.constant 0 : index
    %0 = vector.load %arg1[%c0, %c0_0, %c0_1] : memref<1x128x32xf32, #tpu.memory_space<vmem>>, vector<1x128x32xf32>
    %1 = vector.shape_cast %0 : vector<1x128x32xf32> to vector<128x32xf32>
    %2 = arith.truncf %1 : vector<128x32xf32> to vector<128x32xbf16>
    %3 = vector.shape_cast %2 : vector<128x32xbf16> to vector<1x128x32xbf16>
    %4 = vector.shape_cast %3 : vector<1x128x32xbf16> to vector<1x128x32xbf16>
    %5 = vector.broadcast %4 : vector<1x128x32xbf16> to vector<12x128x32xbf16>
    %c0_2 = arith.constant 0 : index
    %c0_3 = arith.constant 0 : index
    %c0_4 = arith.constant 0 : index
    %6 = vector.load %arg2[%c0_2, %c0_3, %c0_4] : memref<12x32x8xbf16, #tpu.memory_space<vmem>>, vector<12x32x8xbf16>
    "tpu.trace_start"() <{level = 10 : i32, message = "brd,bde->bre"}> : () -> ()
    %cst = arith.constant dense<0.000000e+00> : vector<12x128x8xf32>
    %7 = tpu.matmul %5, %6, %cst {dimension_numbers = #tpu.dot_dimension_numbers<[2], [1], [1], [2], [0, 0, 0, 1, 1, 2], [0], [0]>} : vector<12x128x32xbf16>, vector<12x32x8xbf16>, vector<12x128x8xf32> -> vector<12x128x8xf32>
    "tpu.trace_stop"() : () -> ()
    %8 = vector.extract_strided_slice %7 {offsets = [0, 0, 0], sizes = [4, 128, 8], strides = [1, 1, 1]} : vector<12x128x8xf32> to vector<4x128x8xf32>
    %9 = vector.extract_strided_slice %7 {offsets = [4, 0, 0], sizes = [4, 128, 8], strides = [1, 1, 1]} : vector<12x128x8xf32> to vector<4x128x8xf32>
    %10 = vector.extract_strided_slice %7 {offsets = [8, 0, 0], sizes = [4, 128, 8], strides = [1, 1, 1]} : vector<12x128x8xf32> to vector<4x128x8xf32>
    "tpu.trace_start"() <{level = 10 : i32, message = "hrd,hsd->hrs"}> : () -> ()
    %cst_5 = arith.constant dense<0.000000e+00> : vector<4x128x128xf32>
    %11 = tpu.matmul %8, %9, %cst_5 {dimension_numbers = #tpu.dot_dimension_numbers<[2], [2], [1], [1], [0, 0, 0, 1, 1, 1], [0], [0]>} : vector<4x128x8xf32>, vector<4x128x8xf32>, vector<4x128x128xf32> -> vector<4x128x128xf32>
    "tpu.trace_stop"() : () -> ()
    %c0_6 = arith.constant 0 : index
    %c0_7 = arith.constant 0 : index
    %12 = vector.load %arg5[%c0_6, %c0_7] : memref<128x128xf32, #tpu.memory_space<vmem>>, vector<128x128xf32>
    %13 = vector.shape_cast %12 : vector<128x128xf32> to vector<1x128x128xf32>
    %14 = vector.broadcast %13 : vector<1x128x128xf32> to vector<4x128x128xf32>
    %15 = arith.addf %11, %14 : vector<4x128x128xf32>
    %cst_8 = arith.constant dense<0xFF800000> : vector<4x128xf32>
    %16 = vector.multi_reduction <maximumf>, %15, %cst_8 [2] : vector<4x128x128xf32> to vector<4x128xf32>
    %17 = vector.shape_cast %16 : vector<4x128xf32> to vector<4x128x1xf32>
    %18 = vector.broadcast %17 : vector<4x128x1xf32> to vector<4x128x128xf32>
    %19 = arith.subf %15, %18 : vector<4x128x128xf32>
    %20 = math.exp %19 : vector<4x128x128xf32>
    %cst_9 = arith.constant dense<0.000000e+00> : vector<4x128xf32>
    %21 = vector.multi_reduction <add>, %20, %cst_9 [2] : vector<4x128x128xf32> to vector<4x128xf32>
    %22 = vector.shape_cast %21 : vector<4x128xf32> to vector<4x128x1xf32>
    %23 = tpu.reciprocal %22 {approx = true} : vector<4x128x1xf32> -> vector<4x128x1xf32>
    %24 = vector.broadcast %23 : vector<4x128x1xf32> to vector<4x128x128xf32>
    %25 = arith.mulf %20, %24 : vector<4x128x128xf32>
    "tpu.trace_start"() <{level = 10 : i32, message = "hrs,hsd->hrd"}> : () -> ()
    %cst_10 = arith.constant dense<0.000000e+00> : vector<4x128x8xf32>
    %26 = tpu.matmul %25, %10, %cst_10 {dimension_numbers = #tpu.dot_dimension_numbers<[2], [1], [1], [2], [0, 0, 0, 1, 1, 2], [0], [0]>} : vector<4x128x128xf32>, vector<4x128x8xf32>, vector<4x128x8xf32> -> vector<4x128x8xf32>
    "tpu.trace_stop"() : () -> ()
    %27 = arith.truncf %26 : vector<4x128x8xf32> to vector<4x128x8xbf16>
    %c0_11 = arith.constant 0 : index
    %c0_12 = arith.constant 0 : index
    %c0_13 = arith.constant 0 : index
    %28 = vector.load %arg3[%c0_11, %c0_12, %c0_13] : memref<4x8x32xbf16, #tpu.memory_space<vmem>>, vector<4x8x32xbf16>
    "tpu.trace_start"() <{level = 10 : i32, message = "hrd,hde->hre"}> : () -> ()
    %cst_14 = arith.constant dense<0.000000e+00> : vector<4x128x32xf32>
    %29 = tpu.matmul %27, %28, %cst_14 {dimension_numbers = #tpu.dot_dimension_numbers<[2], [1], [1], [2], [0, 0, 0, 1, 1, 2], [0], [0]>} : vector<4x128x8xbf16>, vector<4x8x32xbf16>, vector<4x128x32xf32> -> vector<4x128x32xf32>
    "tpu.trace_stop"() : () -> ()
    %cst_15 = arith.constant dense<0.000000e+00> : vector<128x32xf32>
    %30 = vector.multi_reduction <add>, %29, %cst_15 [0] : vector<4x128x32xf32> to vector<128x32xf32>
    %c0_16 = arith.constant 0 : index
    %c0_17 = arith.constant 0 : index
    %31 = vector.load %arg4[%c0_16, %c0_17] : memref<1x32xf32, #tpu.memory_space<vmem>>, vector<1x32xf32>
    %32 = vector.broadcast %31 : vector<1x32xf32> to vector<128x32xf32>
    %33 = arith.addf %30, %32 : vector<128x32xf32>
    %c0_18 = arith.constant 0 : index
    %c0_19 = arith.constant 0 : index
    %c0_20 = arith.constant 0 : index
    %34 = vector.load %arg6[%c0_18, %c0_19, %c0_20] : memref<1x128x32xf32, #tpu.memory_space<vmem>>, vector<1x128x32xf32>
    %35 = vector.shape_cast %34 : vector<1x128x32xf32> to vector<128x32xf32>
    %36 = vector.shape_cast %33 : vector<128x32xf32> to vector<1x128x32xf32>
    tpu.vector_store %arg6[%c0_18, %c0_19, %c0_20], %36 {strides = array<i32>} : memref<1x128x32xf32, #tpu.memory_space<vmem>>, vector<1x128x32xf32>,
    return
  }
  func.func @transform_0(%arg0: i32) -> (i32, i32, i32) {
    %c0_i32 = arith.constant 0 : i32
    %c0_i32_0 = arith.constant 0 : i32
    %c0_i32_1 = arith.constant 0 : i32
    return %arg0, %c0_i32, %c0_i32_0 : i32, i32, i32
  }
  func.func @transform_1(%arg0: i32) -> (i32, i32, i32) {
    %c0_i32 = arith.constant 0 : i32
    %c0_i32_0 = arith.constant 0 : i32
    %c0_i32_1 = arith.constant 0 : i32
    %c0_i32_2 = arith.constant 0 : i32
    return %c0_i32, %c0_i32_0, %c0_i32_1 : i32, i32, i32
  }
  func.func @transform_2(%arg0: i32) -> (i32, i32, i32) {
    %c0_i32 = arith.constant 0 : i32
    %c0_i32_0 = arith.constant 0 : i32
    %c0_i32_1 = arith.constant 0 : i32
    %c0_i32_2 = arith.constant 0 : i32
    return %c0_i32, %c0_i32_0, %c0_i32_1 : i32, i32, i32
  }
  func.func @transform_3(%arg0: i32) -> (i32, i32) {
    %c0_i32 = arith.constant 0 : i32
    %c0_i32_0 = arith.constant 0 : i32
    %c0_i32_1 = arith.constant 0 : i32
    return %c0_i32, %c0_i32_0 : i32, i32
  }
  func.func @transform_4(%arg0: i32) -> (i32, i32) {
    %c0_i32 = arith.constant 0 : i32
    %c0_i32_0 = arith.constant 0 : i32
    %c0_i32_1 = arith.constant 0 : i32
    return %c0_i32, %c0_i32_0 : i32, i32
  }
  func.func @transform_5(%arg0: i32) -> (i32, i32, i32) {
    %c0_i32 = arith.constant 0 : i32
    %c0_i32_0 = arith.constant 0 : i32
    %c0_i32_1 = arith.constant 0 : i32
    return %arg0, %c0_i32, %c0_i32_0 : i32, i32, i32
  }
}

</mosaic_0001>

<llo_original>
// kernel: tpu_custom_call.1
$region0: #{tpu_custom_call.1}
  #allocation0 [shape = 'u32[]', space=smem, size = 0x4, offset = 0x4, fixed_abs, tag = 'smem constant byte address 0x4 - core index']
  #allocation1 [shape = 'u32[72,128]{1,0:T(1,128)}', space=vmem, size = 0x9000, scoped, tag = 'internal scratch']
  %s0 = inlined_call_operand.vmem [shape: f32[1,128,32], index: 0, kind: input, shape index: {}]
  %s1 = inlined_call_operand.vmem [shape: bf16[12,32,8], index: 1, kind: input, shape index: {}]
  %s2 = inlined_call_operand.vmem [shape: bf16[4,8,32], index: 2, kind: input, shape index: {}]
  %s3 = inlined_call_operand.vmem [shape: f32[1,32], index: 3, kind: input, shape index: {}]
  %s4 = inlined_call_operand.vmem [shape: f32[128,128], index: 4, kind: input, shape index: {}]
  %s5 = inlined_call_operand.vmem [shape: f32[1,128,32], index: 5, kind: output, shape index: {}]
  %s6 = sld [smem:[#allocation0]]
  $region30: #{tpu_custom_call.1} parent=0
    _
  %s8 = ssub.s32 1, %s6
  %s9 = scalar_select 0, %s8, %s6
  // Predicated region
  $region2: #{tpu_custom_call.1} parent=0 // pred_check
    _
  $region3: #{tpu_custom_call.1} parent=0 // pred_check_branch
    %11 = sbr.rel (0) target = $region5
  $region4: #{tpu_custom_call.1} parent=0 // pred_region
    _
  $region5: #{tpu_custom_call.1} parent=0 // pred_fallthru
    _
  // Predicated region
  $region6: #{tpu_custom_call.1} parent=0 // pred_check
    _
  $region7: #{tpu_custom_call.1} parent=0 // pred_check_branch
    %13 = sbr.rel (0) target = $region9
  $region8: #{tpu_custom_call.1} parent=0 // pred_region
    _
  $region9: #{tpu_custom_call.1} parent=0 // pred_fallthru
    _
  // Predicated region
  $region10: #{tpu_custom_call.1} parent=0 // pred_check
    _
  $region11: #{tpu_custom_call.1} parent=0 // pred_check_branch
    %15 = sbr.rel (0) target = $region13
  $region12: #{tpu_custom_call.1} parent=0 // pred_region
    _
  $region13: #{tpu_custom_call.1} parent=0 // pred_fallthru
    _
  // Predicated region
  $region14: #{tpu_custom_call.1} parent=0 // pred_check
    _
  $region15: #{tpu_custom_call.1} parent=0 // pred_check_branch
    %17 = sbr.rel (0) target = $region17
  $region16: #{tpu_custom_call.1} parent=0 // pred_region
    _
  $region17: #{tpu_custom_call.1} parent=0 // pred_fallthru
    _
  // Predicated region
  $region18: #{tpu_custom_call.1} parent=0 // pred_check
    _
  $region19: #{tpu_custom_call.1} parent=0 // pred_check_branch
    %19 = sbr.rel (0) target = $region21
  $region20: #{tpu_custom_call.1} parent=0 // pred_region
    _
  $region21: #{tpu_custom_call.1} parent=0 // pred_fallthru
    _
  %v21 = vld [vmem:[%s0] sm:$0xff]
  %v22 = vld [vmem:[%s0 + $0x8] sm:$0xff]
  %v23 = vld [vmem:[%s0 + $0x10] sm:$0xff]
  %v24 = vld [vmem:[%s0 + $0x18] sm:$0xff]
  %v25 = vld [vmem:[%s0 + $0x20] sm:$0xff]
  %v26 = vld [vmem:[%s0 + $0x28] sm:$0xff]
  %v27 = vld [vmem:[%s0 + $0x30] sm:$0xff]
  %v28 = vld [vmem:[%s0 + $0x38] sm:$0xff]
  %v29 = vld [vmem:[%s0 + $0x40] sm:$0xff]
  %v30 = vld [vmem:[%s0 + $0x48] sm:$0xff]
  %v31 = vld [vmem:[%s0 + $0x50] sm:$0xff]
  %v32 = vld [vmem:[%s0 + $0x58] sm:$0xff]
  %v33 = vld [vmem:[%s0 + $0x60] sm:$0xff]
  %v34 = vld [vmem:[%s0 + $0x68] sm:$0xff]
  %v35 = vld [vmem:[%s0 + $0x70] sm:$0xff]
  %v36 = vld [vmem:[%s0 + $0x78] sm:$0xff]
  %v37 = vpack.c.bf16 %v21, %v21
  %v38 = vpack.c.bf16 %v22, %v22
  %v39 = vpack.c.bf16 %v23, %v23
  %v40 = vpack.c.bf16 %v24, %v24
  %v41 = vpack.c.bf16 %v25, %v25
  %v42 = vpack.c.bf16 %v26, %v26
  %v43 = vpack.c.bf16 %v27, %v27
  %v44 = vpack.c.bf16 %v28, %v28
  %v45 = vpack.c.bf16 %v29, %v29
  %v46 = vpack.c.bf16 %v30, %v30
  %v47 = vpack.c.bf16 %v31, %v31
  %v48 = vpack.c.bf16 %v32, %v32
  %v49 = vpack.c.bf16 %v33, %v33
  %v50 = vpack.c.bf16 %v34, %v34
  %v51 = vpack.c.bf16 %v35, %v35
  %v52 = vpack.c.bf16 %v36, %v36
  %v53 = vld [vmem:[%s1] sm:$0xf]
  %v54 = vld [vmem:[%s1 + $0x4] sm:$0xf]
  %v55 = vld [vmem:[%s1 + $0x8] sm:$0xf]
  %v56 = vld [vmem:[%s1 + $0xc] sm:$0xf]
  %v57 = vld [vmem:[%s1 + $0x10] sm:$0xf]
  %v58 = vld [vmem:[%s1 + $0x14] sm:$0xf]
  %v59 = vld [vmem:[%s1 + $0x18] sm:$0xf]
  %v60 = vld [vmem:[%s1 + $0x1c] sm:$0xf]
  %v61 = vld [vmem:[%s1 + $0x20] sm:$0xf]
  %v62 = vld [vmem:[%s1 + $0x24] sm:$0xf]
  %v63 = vld [vmem:[%s1 + $0x28] sm:$0xf]
  %v64 = vld [vmem:[%s1 + $0x2c] sm:$0xf]
  %v65 = vld [vmem:[%s1 + $0x30] sm:$0xf]
  %v66 = vld [vmem:[%s1 + $0x34] sm:$0xf]
  %v67 = vld [vmem:[%s1 + $0x38] sm:$0xf]
  %v68 = vld [vmem:[%s1 + $0x3c] sm:$0xf]
  %v69 = vld [vmem:[%s1 + $0x40] sm:$0xf]
  %v70 = vld [vmem:[%s1 + $0x44] sm:$0xf]
  %v71 = vld [vmem:[%s1 + $0x48] sm:$0xf]
  %v72 = vld [vmem:[%s1 + $0x4c] sm:$0xf]
  %v73 = vld [vmem:[%s1 + $0x50] sm:$0xf]
  %v74 = vld [vmem:[%s1 + $0x54] sm:$0xf]
  %v75 = vld [vmem:[%s1 + $0x58] sm:$0xf]
  %v76 = vld [vmem:[%s1 + $0x5c] sm:$0xf]
  %v77 = vld [vmem:[%s1 + $0x60] sm:$0xf]
  %v78 = vld [vmem:[%s1 + $0x64] sm:$0xf]
  %v79 = vld [vmem:[%s1 + $0x68] sm:$0xf]
  %v80 = vld [vmem:[%s1 + $0x6c] sm:$0xf]
  %v81 = vld [vmem:[%s1 + $0x70] sm:$0xf]
  %v82 = vld [vmem:[%s1 + $0x74] sm:$0xf]
  %v83 = vld [vmem:[%s1 + $0x78] sm:$0xf]
  %v84 = vld [vmem:[%s1 + $0x7c] sm:$0xf]
  %v85 = vld [vmem:[%s1 + $0x80] sm:$0xf]
  %v86 = vld [vmem:[%s1 + $0x84] sm:$0xf]
  %v87 = vld [vmem:[%s1 + $0x88] sm:$0xf]
  %v88 = vld [vmem:[%s1 + $0x8c] sm:$0xf]
  %v89 = vld [vmem:[%s1 + $0x90] sm:$0xf]
  %v90 = vld [vmem:[%s1 + $0x94] sm:$0xf]
  %v91 = vld [vmem:[%s1 + $0x98] sm:$0xf]
  %v92 = vld [vmem:[%s1 + $0x9c] sm:$0xf]
  %v93 = vld [vmem:[%s1 + $0xa0] sm:$0xf]
  %v94 = vld [vmem:[%s1 + $0xa4] sm:$0xf]
  %v95 = vld [vmem:[%s1 + $0xa8] sm:$0xf]
  %v96 = vld [vmem:[%s1 + $0xac] sm:$0xf]
  %v97 = vld [vmem:[%s1 + $0xb0] sm:$0xf]
  %v98 = vld [vmem:[%s1 + $0xb4] sm:$0xf]
  %v99 = vld [vmem:[%s1 + $0xb8] sm:$0xf]
  %v100 = vld [vmem:[%s1 + $0xbc] sm:$0xf]
  %v117 = vunpack.c.l.b16 %v37
  %v118 = vunpack.c.l.b16 %v38
  %v119 = vunpack.c.l.b16 %v39
  %v120 = vunpack.c.l.b16 %v40
  %v121 = vunpack.c.l.b16 %v41
  %v122 = vunpack.c.l.b16 %v42
  %v123 = vunpack.c.l.b16 %v43
  %v124 = vunpack.c.l.b16 %v44
  %v125 = vunpack.c.l.b16 %v45
  %v126 = vunpack.c.l.b16 %v46
  %v127 = vunpack.c.l.b16 %v47
  %v128 = vunpack.c.l.b16 %v48
  %v129 = vunpack.c.l.b16 %v49
  %v130 = vunpack.c.l.b16 %v50
  %v131 = vunpack.c.l.b16 %v51
  %v132 = vunpack.c.l.b16 %v52
  %v133 = vpack.c.b16 %v118, %v117
  %v134 = vpack.c.b16 %v120, %v119
  %v135 = vpack.c.b16 %v122, %v121
  %v136 = vpack.c.b16 %v124, %v123
  %v137 = vpack.c.b16 %v126, %v125
  %v138 = vpack.c.b16 %v128, %v127
  %v139 = vpack.c.b16 %v130, %v129
  %v140 = vpack.c.b16 %v132, %v131
  %v145 = vunpack.c.l.b16 %v53
  %v146 = vunpack.c.l.b16 %v54
  %v147 = vunpack.c.l.b16 %v55
  %v148 = vunpack.c.l.b16 %v56
  %v149 = vpack.c.b16 %v146, %v145
  %v150 = vpack.c.b16 %v148, %v147
  %vm153 = vcmask 261120
  %v155 = vsel %vm153, %v133, 0
  %v158 = vsel %vm153, %v134, 0
  %v161 = vsel %vm153, %v135, 0
  %v164 = vsel %vm153, %v136, 0
  %v167 = vsel %vm153, %v137, 0
  %v170 = vsel %vm153, %v138, 0
  %v173 = vsel %vm153, %v139, 0
  %v176 = vsel %vm153, %v140, 0
  %178 = vmatpush.bf16.msra.mxu0 0
  %179 = vmatpush.bf16.msra.mxu0 0
  %180 = vmatpush.bf16.msra.mxu0 0
  %181 = vmatpush.bf16.msra.mxu0 0
  %182 = vmatpush.bf16.msra.mxu0 0
  %183 = vmatpush.bf16.msra.mxu0 0
  %184 = vmatpush.bf16.msra.mxu0 %v150
  %185 = vmatpush.bf16.msra.mxu0 %v149
  %186 = vmatmul.bf16.gmra.mxu0 %v155
  %v187 = vpop.f32.mrf.mxu0
  %v188 = vadd.f32 0.0, %v187
  %v189 = vpop.f32.mrf.mxu0
  %v190 = vadd.f32 0.0, %v189
  %191 = vmatmul.bf16.gmra.mxu0 %v158
  %v192 = vpop.f32.mrf.mxu0
  %v193 = vadd.f32 0.0, %v192
  %v194 = vpop.f32.mrf.mxu0
  %v195 = vadd.f32 0.0, %v194
  %196 = vmatmul.bf16.gmra.mxu0 %v161
  %v197 = vpop.f32.mrf.mxu0
  %v198 = vadd.f32 0.0, %v197
  %v199 = vpop.f32.mrf.mxu0
  %v200 = vadd.f32 0.0, %v199
  %201 = vmatmul.bf16.gmra.mxu0 %v164
  %v202 = vpop.f32.mrf.mxu0
  %v203 = vadd.f32 0.0, %v202
  %v204 = vpop.f32.mrf.mxu0
  %v205 = vadd.f32 0.0, %v204
  %206 = vmatmul.bf16.gmra.mxu0 %v167
  %v207 = vpop.f32.mrf.mxu0
  %v208 = vadd.f32 0.0, %v207
  %v209 = vpop.f32.mrf.mxu0
  %v210 = vadd.f32 0.0, %v209
  %211 = vmatmul.bf16.gmra.mxu0 %v170
  %v212 = vpop.f32.mrf.mxu0
  %v213 = vadd.f32 0.0, %v212
  %v214 = vpop.f32.mrf.mxu0
  %v215 = vadd.f32 0.0, %v214
  %216 = vmatmul.bf16.gmra.mxu0 %v173
  %v217 = vpop.f32.mrf.mxu0
  %v218 = vadd.f32 0.0, %v217
  %v219 = vpop.f32.mrf.mxu0
  %v220 = vadd.f32 0.0, %v219
  %221 = vmatmul.bf16.gmra.mxu0 %v176
  %v222 = vpop.f32.mrf.mxu0
  %v223 = vadd.f32 0.0, %v222
  %v224 = vpop.f32.mrf.mxu0
  %v225 = vadd.f32 0.0, %v224
  %226 = vdwg.mxu0
  %v231 = vunpack.c.l.b16 %v57
  %v232 = vunpack.c.l.b16 %v58
  %v233 = vunpack.c.l.b16 %v59
  %v234 = vunpack.c.l.b16 %v60
  %v235 = vpack.c.b16 %v232, %v231
  %v236 = vpack.c.b16 %v234, %v233
  %239 = vmatpush.bf16.msra.mxu0 0
  %240 = vmatpush.bf16.msra.mxu0 0
  %241 = vmatpush.bf16.msra.mxu0 0
  %242 = vmatpush.bf16.msra.mxu0 0
  %243 = vmatpush.bf16.msra.mxu0 0
  %244 = vmatpush.bf16.msra.mxu0 0
  %245 = vmatpush.bf16.msra.mxu0 %v236
  %246 = vmatpush.bf16.msra.mxu0 %v235
  %247 = vmatmul.bf16.gmra.mxu0 %v155
  %v248 = vpop.f32.mrf.mxu0
  %v249 = vadd.f32 0.0, %v248
  %v250 = vpop.f32.mrf.mxu0
  %v251 = vadd.f32 0.0, %v250
  %252 = vmatmul.bf16.gmra.mxu0 %v158
  %v253 = vpop.f32.mrf.mxu0
  %v254 = vadd.f32 0.0, %v253
  %v255 = vpop.f32.mrf.mxu0
  %v256 = vadd.f32 0.0, %v255
  %257 = vmatmul.bf16.gmra.mxu0 %v161
  %v258 = vpop.f32.mrf.mxu0
  %v259 = vadd.f32 0.0, %v258
  %v260 = vpop.f32.mrf.mxu0
  %v261 = vadd.f32 0.0, %v260
  %262 = vmatmul.bf16.gmra.mxu0 %v164
  %v263 = vpop.f32.mrf.mxu0
  %v264 = vadd.f32 0.0, %v263
  %v265 = vpop.f32.mrf.mxu0
  %v266 = vadd.f32 0.0, %v265
  %267 = vmatmul.bf16.gmra.mxu0 %v167
  %v268 = vpop.f32.mrf.mxu0
  %v269 = vadd.f32 0.0, %v268
  %v270 = vpop.f32.mrf.mxu0
  %v271 = vadd.f32 0.0, %v270
  %272 = vmatmul.bf16.gmra.mxu0 %v170
  %v273 = vpop.f32.mrf.mxu0
  %v274 = vadd.f32 0.0, %v273
  %v275 = vpop.f32.mrf.mxu0
  %v276 = vadd.f32 0.0, %v275
  %277 = vmatmul.bf16.gmra.mxu0 %v173
  %v278 = vpop.f32.mrf.mxu0
  %v279 = vadd.f32 0.0, %v278
  %v280 = vpop.f32.mrf.mxu0
  %v281 = vadd.f32 0.0, %v280
  %282 = vmatmul.bf16.gmra.mxu0 %v176
  %v283 = vpop.f32.mrf.mxu0
  %v284 = vadd.f32 0.0, %v283
  %v285 = vpop.f32.mrf.mxu0
  %v286 = vadd.f32 0.0, %v285
  %287 = vdwg.mxu0
  %v292 = vunpack.c.l.b16 %v61
  %v293 = vunpack.c.l.b16 %v62
  %v294 = vunpack.c.l.b16 %v63
  %v295 = vunpack.c.l.b16 %v64
  %v296 = vpack.c.b16 %v293, %v292
  %v297 = vpack.c.b16 %v295, %v294
  %300 = vmatpush.bf16.msra.mxu0 0
  %301 = vmatpush.bf16.msra.mxu0 0
  %302 = vmatpush.bf16.msra.mxu0 0
  %303 = vmatpush.bf16.msra.mxu0 0
  %304 = vmatpush.bf16.msra.mxu0 0
  %305 = vmatpush.bf16.msra.mxu0 0
  %306 = vmatpush.bf16.msra.mxu0 %v297
  %307 = vmatpush.bf16.msra.mxu0 %v296
  %308 = vmatmul.bf16.gmra.mxu0 %v155
  %v309 = vpop.f32.mrf.mxu0
  %v310 = vadd.f32 0.0, %v309
  %v311 = vpop.f32.mrf.mxu0
  %v312 = vadd.f32 0.0, %v311
  %313 = vmatmul.bf16.gmra.mxu0 %v158
  %v314 = vpop.f32.mrf.mxu0
  %v315 = vadd.f32 0.0, %v314
  %v316 = vpop.f32.mrf.mxu0
  %v317 = vadd.f32 0.0, %v316
  %318 = vmatmul.bf16.gmra.mxu0 %v161
  %v319 = vpop.f32.mrf.mxu0
  %v320 = vadd.f32 0.0, %v319
  %v321 = vpop.f32.mrf.mxu0
  %v322 = vadd.f32 0.0, %v321
  %323 = vmatmul.bf16.gmra.mxu0 %v164
  %v324 = vpop.f32.mrf.mxu0
  %v325 = vadd.f32 0.0, %v324
  %v326 = vpop.f32.mrf.mxu0
  %v327 = vadd.f32 0.0, %v326
  %328 = vmatmul.bf16.gmra.mxu0 %v167
  %v329 = vpop.f32.mrf.mxu0
  %v330 = vadd.f32 0.0, %v329
  %v331 = vpop.f32.mrf.mxu0
  %v332 = vadd.f32 0.0, %v331
  %333 = vmatmul.bf16.gmra.mxu0 %v170
  %v334 = vpop.f32.mrf.mxu0
  %v335 = vadd.f32 0.0, %v334
  %v336 = vpop.f32.mrf.mxu0
  %v337 = vadd.f32 0.0, %v336
  %338 = vmatmul.bf16.gmra.mxu0 %v173
  %v339 = vpop.f32.mrf.mxu0
  %v340 = vadd.f32 0.0, %v339
  %v341 = vpop.f32.mrf.mxu0
  %v342 = vadd.f32 0.0, %v341
  %343 = vmatmul.bf16.gmra.mxu0 %v176
  %v344 = vpop.f32.mrf.mxu0
  %v345 = vadd.f32 0.0, %v344
  %v346 = vpop.f32.mrf.mxu0
  %v347 = vadd.f32 0.0, %v346
  %348 = vdwg.mxu0
  %v353 = vunpack.c.l.b16 %v65
  %v354 = vunpack.c.l.b16 %v66
  %v355 = vunpack.c.l.b16 %v67
  %v356 = vunpack.c.l.b16 %v68
  %v357 = vpack.c.b16 %v354, %v353
  %v358 = vpack.c.b16 %v356, %v355
  %361 = vmatpush.bf16.msra.mxu0 0
  %362 = vmatpush.bf16.msra.mxu0 0
  %363 = vmatpush.bf16.msra.mxu0 0
  %364 = vmatpush.bf16.msra.mxu0 0
  %365 = vmatpush.bf16.msra.mxu0 0
  %366 = vmatpush.bf16.msra.mxu0 0
  %367 = vmatpush.bf16.msra.mxu0 %v358
  %368 = vmatpush.bf16.msra.mxu0 %v357
  %369 = vmatmul.bf16.gmra.mxu0 %v155
  %v370 = vpop.f32.mrf.mxu0
  %v371 = vadd.f32 0.0, %v370
  %v372 = vpop.f32.mrf.mxu0
  %v373 = vadd.f32 0.0, %v372
  %374 = vmatmul.bf16.gmra.mxu0 %v158
  %v375 = vpop.f32.mrf.mxu0
  %v376 = vadd.f32 0.0, %v375
  %v377 = vpop.f32.mrf.mxu0
  %v378 = vadd.f32 0.0, %v377
  %379 = vmatmul.bf16.gmra.mxu0 %v161
  %v380 = vpop.f32.mrf.mxu0
  %v381 = vadd.f32 0.0, %v380
  %v382 = vpop.f32.mrf.mxu0
  %v383 = vadd.f32 0.0, %v382
  %384 = vmatmul.bf16.gmra.mxu0 %v164
  %v385 = vpop.f32.mrf.mxu0
  %v386 = vadd.f32 0.0, %v385
  %v387 = vpop.f32.mrf.mxu0
  %v388 = vadd.f32 0.0, %v387
  %389 = vmatmul.bf16.gmra.mxu0 %v167
  %v390 = vpop.f32.mrf.mxu0
  %v391 = vadd.f32 0.0, %v390
  %v392 = vpop.f32.mrf.mxu0
  %v393 = vadd.f32 0.0, %v392
  %394 = vmatmul.bf16.gmra.mxu0 %v170
  %v395 = vpop.f32.mrf.mxu0
  %v396 = vadd.f32 0.0, %v395
  %v397 = vpop.f32.mrf.mxu0
  %v398 = vadd.f32 0.0, %v397
  %399 = vmatmul.bf16.gmra.mxu0 %v173
  %v400 = vpop.f32.mrf.mxu0
  %v401 = vadd.f32 0.0, %v400
  %v402 = vpop.f32.mrf.mxu0
  %v403 = vadd.f32 0.0, %v402
  %404 = vmatmul.bf16.gmra.mxu0 %v176
  %v405 = vpop.f32.mrf.mxu0
  %v406 = vadd.f32 0.0, %v405
  %v407 = vpop.f32.mrf.mxu0
  %v408 = vadd.f32 0.0, %v407
  %409 = vdwg.mxu0
  %v414 = vunpack.c.l.b16 %v69
  %v415 = vunpack.c.l.b16 %v70
  %v416 = vunpack.c.l.b16 %v71
  %v417 = vunpack.c.l.b16 %v72
  %v418 = vpack.c.b16 %v415, %v414
  %v419 = vpack.c.b16 %v417, %v416
  %422 = vmatpush.bf16.msra.mxu0 0
  %423 = vmatpush.bf16.msra.mxu0 0
  %424 = vmatpush.bf16.msra.mxu0 0
  %425 = vmatpush.bf16.msra.mxu0 0
  %426 = vmatpush.bf16.msra.mxu0 0
  %427 = vmatpush.bf16.msra.mxu0 0
  %428 = vmatpush.bf16.msra.mxu0 %v419
  %429 = vmatpush.bf16.msra.mxu0 %v418
  %430 = vmatmul.bf16.gmra.mxu0 %v155
  %v431 = vpop.f32.mrf.mxu0
  %v432 = vadd.f32 0.0, %v431
  %v433 = vpop.f32.mrf.mxu0
  %v434 = vadd.f32 0.0, %v433
  %435 = vmatmul.bf16.gmra.mxu0 %v158
  %v436 = vpop.f32.mrf.mxu0
  %v437 = vadd.f32 0.0, %v436
  %v438 = vpop.f32.mrf.mxu0
  %v439 = vadd.f32 0.0, %v438
  %440 = vmatmul.bf16.gmra.mxu0 %v161
  %v441 = vpop.f32.mrf.mxu0
  %v442 = vadd.f32 0.0, %v441
  %v443 = vpop.f32.mrf.mxu0
  %v444 = vadd.f32 0.0, %v443
  %445 = vmatmul.bf16.gmra.mxu0 %v164
  %v446 = vpop.f32.mrf.mxu0
  %v447 = vadd.f32 0.0, %v446
  %v448 = vpop.f32.mrf.mxu0
  %v449 = vadd.f32 0.0, %v448
  %450 = vmatmul.bf16.gmra.mxu0 %v167
  %v451 = vpop.f32.mrf.mxu0
  %v452 = vadd.f32 0.0, %v451
  %v453 = vpop.f32.mrf.mxu0
  %v454 = vadd.f32 0.0, %v453
  %455 = vmatmul.bf16.gmra.mxu0 %v170
  %v456 = vpop.f32.mrf.mxu0
  %v457 = vadd.f32 0.0, %v456
  %v458 = vpop.f32.mrf.mxu0
  %v459 = vadd.f32 0.0, %v458
  %460 = vmatmul.bf16.gmra.mxu0 %v173
  %v461 = vpop.f32.mrf.mxu0
  %v462 = vadd.f32 0.0, %v461
  %v463 = vpop.f32.mrf.mxu0
  %v464 = vadd.f32 0.0, %v463
  %465 = vmatmul.bf16.gmra.mxu0 %v176
  %v466 = vpop.f32.mrf.mxu0
  %v467 = vadd.f32 0.0, %v466
  %v468 = vpop.f32.mrf.mxu0
  %v469 = vadd.f32 0.0, %v468
  %470 = vdwg.mxu0
  %v475 = vunpack.c.l.b16 %v73
  %v476 = vunpack.c.l.b16 %v74
  %v477 = vunpack.c.l.b16 %v75
  %v478 = vunpack.c.l.b16 %v76
  %v479 = vpack.c.b16 %v476, %v475
  %v480 = vpack.c.b16 %v478, %v477
  %483 = vmatpush.bf16.msra.mxu0 0
  %484 = vmatpush.bf16.msra.mxu0 0
  %485 = vmatpush.bf16.msra.mxu0 0
  %486 = vmatpush.bf16.msra.mxu0 0
  %487 = vmatpush.bf16.msra.mxu0 0
  %488 = vmatpush.bf16.msra.mxu0 0
  %489 = vmatpush.bf16.msra.mxu0 %v480
  %490 = vmatpush.bf16.msra.mxu0 %v479
  %491 = vmatmul.bf16.gmra.mxu0 %v155
  %v492 = vpop.f32.mrf.mxu0
  %v493 = vadd.f32 0.0, %v492
  %v494 = vpop.f32.mrf.mxu0
  %v495 = vadd.f32 0.0, %v494
  %496 = vmatmul.bf16.gmra.mxu0 %v158
  %v497 = vpop.f32.mrf.mxu0
  %v498 = vadd.f32 0.0, %v497
  %v499 = vpop.f32.mrf.mxu0
  %v500 = vadd.f32 0.0, %v499
  %501 = vmatmul.bf16.gmra.mxu0 %v161
  %v502 = vpop.f32.mrf.mxu0
  %v503 = vadd.f32 0.0, %v502
  %v504 = vpop.f32.mrf.mxu0
  %v505 = vadd.f32 0.0, %v504
  %506 = vmatmul.bf16.gmra.mxu0 %v164
  %v507 = vpop.f32.mrf.mxu0
  %v508 = vadd.f32 0.0, %v507
  %v509 = vpop.f32.mrf.mxu0
  %v510 = vadd.f32 0.0, %v509
  %511 = vmatmul.bf16.gmra.mxu0 %v167
  %v512 = vpop.f32.mrf.mxu0
  %v513 = vadd.f32 0.0, %v512
  %v514 = vpop.f32.mrf.mxu0
  %v515 = vadd.f32 0.0, %v514
  %516 = vmatmul.bf16.gmra.mxu0 %v170
  %v517 = vpop.f32.mrf.mxu0
  %v518 = vadd.f32 0.0, %v517
  %v519 = vpop.f32.mrf.mxu0
  %v520 = vadd.f32 0.0, %v519
  %521 = vmatmul.bf16.gmra.mxu0 %v173
  %v522 = vpop.f32.mrf.mxu0
  %v523 = vadd.f32 0.0, %v522
  %v524 = vpop.f32.mrf.mxu0
  %v525 = vadd.f32 0.0, %v524
  %526 = vmatmul.bf16.gmra.mxu0 %v176
  %v527 = vpop.f32.mrf.mxu0
  %v528 = vadd.f32 0.0, %v527
  %v529 = vpop.f32.mrf.mxu0
  %v530 = vadd.f32 0.0, %v529
  %531 = vdwg.mxu0
  %v536 = vunpack.c.l.b16 %v77
  %v537 = vunpack.c.l.b16 %v78
  %v538 = vunpack.c.l.b16 %v79
  %v539 = vunpack.c.l.b16 %v80
  %v540 = vpack.c.b16 %v537, %v536
  %v541 = vpack.c.b16 %v539, %v538
  %544 = vmatpush.bf16.msra.mxu0 0
  %545 = vmatpush.bf16.msra.mxu0 0
  %546 = vmatpush.bf16.msra.mxu0 0
  %547 = vmatpush.bf16.msra.mxu0 0
  %548 = vmatpush.bf16.msra.mxu0 0
  %549 = vmatpush.bf16.msra.mxu0 0
  %550 = vmatpush.bf16.msra.mxu0 %v541
  %551 = vmatpush.bf16.msra.mxu0 %v540
  %552 = vmatmul.bf16.gmra.mxu0 %v155
  %v553 = vpop.f32.mrf.mxu0
  %v554 = vadd.f32 0.0, %v553
  %v555 = vpop.f32.mrf.mxu0
  %v556 = vadd.f32 0.0, %v555
  %557 = vmatmul.bf16.gmra.mxu0 %v158
  %v558 = vpop.f32.mrf.mxu0
  %v559 = vadd.f32 0.0, %v558
  %v560 = vpop.f32.mrf.mxu0
  %v561 = vadd.f32 0.0, %v560
  %562 = vmatmul.bf16.gmra.mxu0 %v161
  %v563 = vpop.f32.mrf.mxu0
  %v564 = vadd.f32 0.0, %v563
  %v565 = vpop.f32.mrf.mxu0
  %v566 = vadd.f32 0.0, %v565
  %567 = vmatmul.bf16.gmra.mxu0 %v164
  %v568 = vpop.f32.mrf.mxu0
  %v569 = vadd.f32 0.0, %v568
  %v570 = vpop.f32.mrf.mxu0
  %v571 = vadd.f32 0.0, %v570
  %572 = vmatmul.bf16.gmra.mxu0 %v167
  %v573 = vpop.f32.mrf.mxu0
  %v574 = vadd.f32 0.0, %v573
  %v575 = vpop.f32.mrf.mxu0
  %v576 = vadd.f32 0.0, %v575
  %577 = vmatmul.bf16.gmra.mxu0 %v170
  %v578 = vpop.f32.mrf.mxu0
  %v579 = vadd.f32 0.0, %v578
  %v580 = vpop.f32.mrf.mxu0
  %v581 = vadd.f32 0.0, %v580
  %582 = vmatmul.bf16.gmra.mxu0 %v173
  %v583 = vpop.f32.mrf.mxu0
  %v584 = vadd.f32 0.0, %v583
  %v585 = vpop.f32.mrf.mxu0
  %v586 = vadd.f32 0.0, %v585
  %587 = vmatmul.bf16.gmra.mxu0 %v176
  %v588 = vpop.f32.mrf.mxu0
  %v589 = vadd.f32 0.0, %v588
  %v590 = vpop.f32.mrf.mxu0
  %v591 = vadd.f32 0.0, %v590
  %592 = vdwg.mxu0
  %v597 = vunpack.c.l.b16 %v81
  %v598 = vunpack.c.l.b16 %v82
  %v599 = vunpack.c.l.b16 %v83
  %v600 = vunpack.c.l.b16 %v84
  %v601 = vpack.c.b16 %v598, %v597
  %v602 = vpack.c.b16 %v600, %v599
  %605 = vmatpush.bf16.msra.mxu0 0
  %606 = vmatpush.bf16.msra.mxu0 0
  %607 = vmatpush.bf16.msra.mxu0 0
  %608 = vmatpush.bf16.msra.mxu0 0
  %609 = vmatpush.bf16.msra.mxu0 0
  %610 = vmatpush.bf16.msra.mxu0 0
  %611 = vmatpush.bf16.msra.mxu0 %v602
  %612 = vmatpush.bf16.msra.mxu0 %v601
  %613 = vmatmul.bf16.gmra.mxu0 %v155
  %v614 = vpop.f32.mrf.mxu0
  %v615 = vadd.f32 0.0, %v614
  %v616 = vpop.f32.mrf.mxu0
  %v617 = vadd.f32 0.0, %v616
  %618 = vmatmul.bf16.gmra.mxu0 %v158
  %v619 = vpop.f32.mrf.mxu0
  %v620 = vadd.f32 0.0, %v619
  %v621 = vpop.f32.mrf.mxu0
  %v622 = vadd.f32 0.0, %v621
  %623 = vmatmul.bf16.gmra.mxu0 %v161
  %v624 = vpop.f32.mrf.mxu0
  %v625 = vadd.f32 0.0, %v624
  %v626 = vpop.f32.mrf.mxu0
  %v627 = vadd.f32 0.0, %v626
  %628 = vmatmul.bf16.gmra.mxu0 %v164
  %v629 = vpop.f32.mrf.mxu0
  %v630 = vadd.f32 0.0, %v629
  %v631 = vpop.f32.mrf.mxu0
  %v632 = vadd.f32 0.0, %v631
  %633 = vmatmul.bf16.gmra.mxu0 %v167
  %v634 = vpop.f32.mrf.mxu0
  %v635 = vadd.f32 0.0, %v634
  %v636 = vpop.f32.mrf.mxu0
  %v637 = vadd.f32 0.0, %v636
  %638 = vmatmul.bf16.gmra.mxu0 %v170
  %v639 = vpop.f32.mrf.mxu0
  %v640 = vadd.f32 0.0, %v639
  %v641 = vpop.f32.mrf.mxu0
  %v642 = vadd.f32 0.0, %v641
  %643 = vmatmul.bf16.gmra.mxu0 %v173
  %v644 = vpop.f32.mrf.mxu0
  %v645 = vadd.f32 0.0, %v644
  %v646 = vpop.f32.mrf.mxu0
  %v647 = vadd.f32 0.0, %v646
  %648 = vmatmul.bf16.gmra.mxu0 %v176
  %v649 = vpop.f32.mrf.mxu0
  %v650 = vadd.f32 0.0, %v649
  %v651 = vpop.f32.mrf.mxu0
  %v652 = vadd.f32 0.0, %v651
  %653 = vdwg.mxu0
  %v658 = vunpack.c.l.b16 %v85
  %v659 = vunpack.c.l.b16 %v86
  %v660 = vunpack.c.l.b16 %v87
  %v661 = vunpack.c.l.b16 %v88
  %v662 = vpack.c.b16 %v659, %v658
  %v663 = vpack.c.b16 %v661, %v660
  %666 = vmatpush.bf16.msra.mxu0 0
  %667 = vmatpush.bf16.msra.mxu0 0
  %668 = vmatpush.bf16.msra.mxu0 0
  %669 = vmatpush.bf16.msra.mxu0 0
  %670 = vmatpush.bf16.msra.mxu0 0
  %671 = vmatpush.bf16.msra.mxu0 0
  %672 = vmatpush.bf16.msra.mxu0 %v663
  %673 = vmatpush.bf16.msra.mxu0 %v662
  %674 = vmatmul.bf16.gmra.mxu0 %v155
  %v675 = vpop.f32.mrf.mxu0
  %v676 = vadd.f32 0.0, %v675
  %v677 = vpop.f32.mrf.mxu0
  %v678 = vadd.f32 0.0, %v677
  %679 = vmatmul.bf16.gmra.mxu0 %v158
  %v680 = vpop.f32.mrf.mxu0
  %v681 = vadd.f32 0.0, %v680
  %v682 = vpop.f32.mrf.mxu0
  %v683 = vadd.f32 0.0, %v682
  %684 = vmatmul.bf16.gmra.mxu0 %v161
  %v685 = vpop.f32.mrf.mxu0
  %v686 = vadd.f32 0.0, %v685
  %v687 = vpop.f32.mrf.mxu0
  %v688 = vadd.f32 0.0, %v687
  %689 = vmatmul.bf16.gmra.mxu0 %v164
  %v690 = vpop.f32.mrf.mxu0
  %v691 = vadd.f32 0.0, %v690
  %v692 = vpop.f32.mrf.mxu0
  %v693 = vadd.f32 0.0, %v692
  %694 = vmatmul.bf16.gmra.mxu0 %v167
  %v695 = vpop.f32.mrf.mxu0
  %v696 = vadd.f32 0.0, %v695
  %v697 = vpop.f32.mrf.mxu0
  %v698 = vadd.f32 0.0, %v697
  %699 = vmatmul.bf16.gmra.mxu0 %v170
  %v700 = vpop.f32.mrf.mxu0
  %v701 = vadd.f32 0.0, %v700
  %v702 = vpop.f32.mrf.mxu0
  %v703 = vadd.f32 0.0, %v702
  %704 = vmatmul.bf16.gmra.mxu0 %v173
  %v705 = vpop.f32.mrf.mxu0
  %v706 = vadd.f32 0.0, %v705
  %v707 = vpop.f32.mrf.mxu0
  %v708 = vadd.f32 0.0, %v707
  %709 = vmatmul.bf16.gmra.mxu0 %v176
  %v710 = vpop.f32.mrf.mxu0
  %v711 = vadd.f32 0.0, %v710
  %v712 = vpop.f32.mrf.mxu0
  %v713 = vadd.f32 0.0, %v712
  %714 = vdwg.mxu0
  %v719 = vunpack.c.l.b16 %v89
  %v720 = vunpack.c.l.b16 %v90
  %v721 = vunpack.c.l.b16 %v91
  %v722 = vunpack.c.l.b16 %v92
  %v723 = vpack.c.b16 %v720, %v719
  %v724 = vpack.c.b16 %v722, %v721
  %727 = vmatpush.bf16.msra.mxu0 0
  %728 = vmatpush.bf16.msra.mxu0 0
  %729 = vmatpush.bf16.msra.mxu0 0
  %730 = vmatpush.bf16.msra.mxu0 0
  %731 = vmatpush.bf16.msra.mxu0 0
  %732 = vmatpush.bf16.msra.mxu0 0
  %733 = vmatpush.bf16.msra.mxu0 %v724
  %734 = vmatpush.bf16.msra.mxu0 %v723
  %735 = vmatmul.bf16.gmra.mxu0 %v155
  %v736 = vpop.f32.mrf.mxu0
  %v737 = vadd.f32 0.0, %v736
  %v738 = vpop.f32.mrf.mxu0
  %v739 = vadd.f32 0.0, %v738
  %740 = vmatmul.bf16.gmra.mxu0 %v158
  %v741 = vpop.f32.mrf.mxu0
  %v742 = vadd.f32 0.0, %v741
  %v743 = vpop.f32.mrf.mxu0
  %v744 = vadd.f32 0.0, %v743
  %745 = vmatmul.bf16.gmra.mxu0 %v161
  %v746 = vpop.f32.mrf.mxu0
  %v747 = vadd.f32 0.0, %v746
  %v748 = vpop.f32.mrf.mxu0
  %v749 = vadd.f32 0.0, %v748
  %750 = vmatmul.bf16.gmra.mxu0 %v164
  %v751 = vpop.f32.mrf.mxu0
  %v752 = vadd.f32 0.0, %v751
  %v753 = vpop.f32.mrf.mxu0
  %v754 = vadd.f32 0.0, %v753
  %755 = vmatmul.bf16.gmra.mxu0 %v167
  %v756 = vpop.f32.mrf.mxu0
  %v757 = vadd.f32 0.0, %v756
  %v758 = vpop.f32.mrf.mxu0
  %v759 = vadd.f32 0.0, %v758
  %760 = vmatmul.bf16.gmra.mxu0 %v170
  %v761 = vpop.f32.mrf.mxu0
  %v762 = vadd.f32 0.0, %v761
  %v763 = vpop.f32.mrf.mxu0
  %v764 = vadd.f32 0.0, %v763
  %765 = vmatmul.bf16.gmra.mxu0 %v173
  %v766 = vpop.f32.mrf.mxu0
  %v767 = vadd.f32 0.0, %v766
  %v768 = vpop.f32.mrf.mxu0
  %v769 = vadd.f32 0.0, %v768
  %770 = vmatmul.bf16.gmra.mxu0 %v176
  %v771 = vpop.f32.mrf.mxu0
  %v772 = vadd.f32 0.0, %v771
  %v773 = vpop.f32.mrf.mxu0
  %v774 = vadd.f32 0.0, %v773
  %775 = vdwg.mxu0
  %v780 = vunpack.c.l.b16 %v93
  %v781 = vunpack.c.l.b16 %v94
  %v782 = vunpack.c.l.b16 %v95
  %v783 = vunpack.c.l.b16 %v96
  %v784 = vpack.c.b16 %v781, %v780
  %v785 = vpack.c.b16 %v783, %v782
  %788 = vmatpush.bf16.msra.mxu0 0
  %789 = vmatpush.bf16.msra.mxu0 0
  %790 = vmatpush.bf16.msra.mxu0 0
  %791 = vmatpush.bf16.msra.mxu0 0
  %792 = vmatpush.bf16.msra.mxu0 0
  %793 = vmatpush.bf16.msra.mxu0 0
  %794 = vmatpush.bf16.msra.mxu0 %v785
  %795 = vmatpush.bf16.msra.mxu0 %v784
  %796 = vmatmul.bf16.gmra.mxu0 %v155
  %v797 = vpop.f32.mrf.mxu0
  %v798 = vadd.f32 0.0, %v797
  %v799 = vpop.f32.mrf.mxu0
  %v800 = vadd.f32 0.0, %v799
  %801 = vmatmul.bf16.gmra.mxu0 %v158
  %v802 = vpop.f32.mrf.mxu0
  %v803 = vadd.f32 0.0, %v802
  %v804 = vpop.f32.mrf.mxu0
  %v805 = vadd.f32 0.0, %v804
  %806 = vmatmul.bf16.gmra.mxu0 %v161
  %v807 = vpop.f32.mrf.mxu0
  %v808 = vadd.f32 0.0, %v807
  %v809 = vpop.f32.mrf.mxu0
  %v810 = vadd.f32 0.0, %v809
  %811 = vmatmul.bf16.gmra.mxu0 %v164
  %v812 = vpop.f32.mrf.mxu0
  %v813 = vadd.f32 0.0, %v812
  %v814 = vpop.f32.mrf.mxu0
  %v815 = vadd.f32 0.0, %v814
  %816 = vmatmul.bf16.gmra.mxu0 %v167
  %v817 = vpop.f32.mrf.mxu0
  %v818 = vadd.f32 0.0, %v817
  %v819 = vpop.f32.mrf.mxu0
  %v820 = vadd.f32 0.0, %v819
  %821 = vmatmul.bf16.gmra.mxu0 %v170
  %v822 = vpop.f32.mrf.mxu0
  %v823 = vadd.f32 0.0, %v822
  %v824 = vpop.f32.mrf.mxu0
  %v825 = vadd.f32 0.0, %v824
  %826 = vmatmul.bf16.gmra.mxu0 %v173
  %v827 = vpop.f32.mrf.mxu0
  %v828 = vadd.f32 0.0, %v827
  %v829 = vpop.f32.mrf.mxu0
  %v830 = vadd.f32 0.0, %v829
  %831 = vmatmul.bf16.gmra.mxu0 %v176
  %v832 = vpop.f32.mrf.mxu0
  %v833 = vadd.f32 0.0, %v832
  %v834 = vpop.f32.mrf.mxu0
  %v835 = vadd.f32 0.0, %v834
  %836 = vdwg.mxu0
  %v841 = vunpack.c.l.b16 %v97
  %v842 = vunpack.c.l.b16 %v98
  %v843 = vunpack.c.l.b16 %v99
  %v844 = vunpack.c.l.b16 %v100
  %v845 = vpack.c.b16 %v842, %v841
  %v846 = vpack.c.b16 %v844, %v843
  %849 = vmatpush.bf16.msra.mxu0 0
  %850 = vmatpush.bf16.msra.mxu0 0
  %851 = vmatpush.bf16.msra.mxu0 0
  %852 = vmatpush.bf16.msra.mxu0 0
  %853 = vmatpush.bf16.msra.mxu0 0
  %854 = vmatpush.bf16.msra.mxu0 0
  %855 = vmatpush.bf16.msra.mxu0 %v846
  %856 = vmatpush.bf16.msra.mxu0 %v845
  %857 = vmatmul.bf16.gmra.mxu0 %v155
  %v858 = vpop.f32.mrf.mxu0
  %v859 = vadd.f32 0.0, %v858
  %v860 = vpop.f32.mrf.mxu0
  %v861 = vadd.f32 0.0, %v860
  %862 = vmatmul.bf16.gmra.mxu0 %v158
  %v863 = vpop.f32.mrf.mxu0
  %v864 = vadd.f32 0.0, %v863
  %v865 = vpop.f32.mrf.mxu0
  %v866 = vadd.f32 0.0, %v865
  %867 = vmatmul.bf16.gmra.mxu0 %v161
  %v868 = vpop.f32.mrf.mxu0
  %v869 = vadd.f32 0.0, %v868
  %v870 = vpop.f32.mrf.mxu0
  %v871 = vadd.f32 0.0, %v870
  %872 = vmatmul.bf16.gmra.mxu0 %v164
  %v873 = vpop.f32.mrf.mxu0
  %v874 = vadd.f32 0.0, %v873
  %v875 = vpop.f32.mrf.mxu0
  %v876 = vadd.f32 0.0, %v875
  %877 = vmatmul.bf16.gmra.mxu0 %v167
  %v878 = vpop.f32.mrf.mxu0
  %v879 = vadd.f32 0.0, %v878
  %v880 = vpop.f32.mrf.mxu0
  %v881 = vadd.f32 0.0, %v880
  %882 = vmatmul.bf16.gmra.mxu0 %v170
  %v883 = vpop.f32.mrf.mxu0
  %v884 = vadd.f32 0.0, %v883
  %v885 = vpop.f32.mrf.mxu0
  %v886 = vadd.f32 0.0, %v885
  %887 = vmatmul.bf16.gmra.mxu0 %v173
  %v888 = vpop.f32.mrf.mxu0
  %v889 = vadd.f32 0.0, %v888
  %v890 = vpop.f32.mrf.mxu0
  %v891 = vadd.f32 0.0, %v890
  %892 = vmatmul.bf16.gmra.mxu0 %v176
  %v893 = vpop.f32.mrf.mxu0
  %v894 = vadd.f32 0.0, %v893
  %v895 = vpop.f32.mrf.mxu0
  %v896 = vadd.f32 0.0, %v895
  %897 = vdwg.mxu0
  %v898 = vld [vmem:[%s4] sm:$0xff]
  %v899 = vld [vmem:[%s4 + $0x8] sm:$0xff]
  %v900 = vld [vmem:[%s4 + $0x10] sm:$0xff]
  %v901 = vld [vmem:[%s4 + $0x18] sm:$0xff]
  %v902 = vld [vmem:[%s4 + $0x20] sm:$0xff]
  %v903 = vld [vmem:[%s4 + $0x28] sm:$0xff]
  %v904 = vld [vmem:[%s4 + $0x30] sm:$0xff]
  %v905 = vld [vmem:[%s4 + $0x38] sm:$0xff]
  %v906 = vld [vmem:[%s4 + $0x40] sm:$0xff]
  %v907 = vld [vmem:[%s4 + $0x48] sm:$0xff]
  %v908 = vld [vmem:[%s4 + $0x50] sm:$0xff]
  %v909 = vld [vmem:[%s4 + $0x58] sm:$0xff]
  %v910 = vld [vmem:[%s4 + $0x60] sm:$0xff]
  %v911 = vld [vmem:[%s4 + $0x68] sm:$0xff]
  %v912 = vld [vmem:[%s4 + $0x70] sm:$0xff]
  %v913 = vld [vmem:[%s4 + $0x78] sm:$0xff]
  %vm914 = vcmask 64512
  %v916 = vsel %vm914, %v188, 0
  %v919 = vsel %vm914, %v190, 0
  %v922 = vsel %vm914, %v193, 0
  %v925 = vsel %vm914, %v195, 0
  %v928 = vsel %vm914, %v198, 0
  %v931 = vsel %vm914, %v200, 0
  %v934 = vsel %vm914, %v203, 0
  %v937 = vsel %vm914, %v205, 0
  %v940 = vsel %vm914, %v208, 0
  %v943 = vsel %vm914, %v210, 0
  %v946 = vsel %vm914, %v213, 0
  %v949 = vsel %vm914, %v215, 0
  %v952 = vsel %vm914, %v218, 0
  %v955 = vsel %vm914, %v220, 0
  %v958 = vsel %vm914, %v223, 0
  %v961 = vsel %vm914, %v225, 0
  %v964 = vsel %vm914, %v432, 0
  %v967 = vsel %vm914, %v434, 0
  %v970 = vsel %vm914, %v437, 0
  %v973 = vsel %vm914, %v439, 0
  %v976 = vsel %vm914, %v442, 0
  %v979 = vsel %vm914, %v444, 0
  %v982 = vsel %vm914, %v447, 0
  %v985 = vsel %vm914, %v449, 0
  %v988 = vsel %vm914, %v452, 0
  %v991 = vsel %vm914, %v454, 0
  %v994 = vsel %vm914, %v457, 0
  %v997 = vsel %vm914, %v459, 0
  %v1000 = vsel %vm914, %v462, 0
  %v1003 = vsel %vm914, %v464, 0
  %v1006 = vsel %vm914, %v467, 0
  %v1009 = vsel %vm914, %v469, 0
  %1011 = vmatpush.xpose.msra.mxu0 %v1009
  %1012 = vmatpush.xpose.msra.mxu0 %v1006
  %1013 = vmatpush.xpose.msra.mxu0 %v1003
  %1014 = vmatpush.xpose.msra.mxu0 %v1000
  %1015 = vmatpush.xpose.msra.mxu0 %v997
  %1016 = vmatpush.xpose.msra.mxu0 %v994
  %1017 = vmatpush.xpose.msra.mxu0 %v991
  %1018 = vmatpush.xpose.msra.mxu0 %v988
  %1019 = vmatpush.xpose.msra.mxu0 %v985
  %1020 = vmatpush.xpose.msra.mxu0 %v982
  %1021 = vmatpush.xpose.msra.mxu0 %v979
  %1022 = vmatpush.xpose.msra.mxu0 %v976
  %1023 = vmatpush.xpose.msra.mxu0 %v973
  %1024 = vmatpush.xpose.msra.mxu0 %v970
  %1025 = vmatpush.xpose.msra.mxu0 %v967
  %1026 = vmatpush.xpose.msra.mxu0 %v964
  %1027 = vmatmul.f32.gmra.mxu0 %v916
  %v1028 = vpop.f32.mrf.mxu0
  %v1029 = vadd.f32 %v898, %v1028
  %1030 = vmatmul.f32.gmra.mxu0 %v919
  %v1031 = vpop.f32.mrf.mxu0
  %v1032 = vadd.f32 %v899, %v1031
  %1033 = vmatmul.f32.gmra.mxu0 %v922
  %v1034 = vpop.f32.mrf.mxu0
  %v1035 = vadd.f32 %v900, %v1034
  %1036 = vmatmul.f32.gmra.mxu0 %v925
  %v1037 = vpop.f32.mrf.mxu0
  %v1038 = vadd.f32 %v901, %v1037
  %1039 = vmatmul.f32.gmra.mxu0 %v928
  %v1040 = vpop.f32.mrf.mxu0
  %v1041 = vadd.f32 %v902, %v1040
  %1042 = vmatmul.f32.gmra.mxu0 %v931
  %v1043 = vpop.f32.mrf.mxu0
  %v1044 = vadd.f32 %v903, %v1043
  %1045 = vmatmul.f32.gmra.mxu0 %v934
  %v1046 = vpop.f32.mrf.mxu0
  %v1047 = vadd.f32 %v904, %v1046
  %1048 = vmatmul.f32.gmra.mxu0 %v937
  %v1049 = vpop.f32.mrf.mxu0
  %v1050 = vadd.f32 %v905, %v1049
  %1051 = vmatmul.f32.gmra.mxu0 %v940
  %v1052 = vpop.f32.mrf.mxu0
  %v1053 = vadd.f32 %v906, %v1052
  %1054 = vmatmul.f32.gmra.mxu0 %v943
  %v1055 = vpop.f32.mrf.mxu0
  %v1056 = vadd.f32 %v907, %v1055
  %1057 = vmatmul.f32.gmra.mxu0 %v946
  %v1058 = vpop.f32.mrf.mxu0
  %v1059 = vadd.f32 %v908, %v1058
  %1060 = vmatmul.f32.gmra.mxu0 %v949
  %v1061 = vpop.f32.mrf.mxu0
  %v1062 = vadd.f32 %v909, %v1061
  %1063 = vmatmul.f32.gmra.mxu0 %v952
  %v1064 = vpop.f32.mrf.mxu0
  %v1065 = vadd.f32 %v910, %v1064
  %1066 = vmatmul.f32.gmra.mxu0 %v955
  %v1067 = vpop.f32.mrf.mxu0
  %v1068 = vadd.f32 %v911, %v1067
  %1069 = vmatmul.f32.gmra.mxu0 %v958
  %v1070 = vpop.f32.mrf.mxu0
  %v1071 = vadd.f32 %v912, %v1070
  %1072 = vmatmul.f32.gmra.mxu0 %v961
  %v1073 = vpop.f32.mrf.mxu0
  %v1074 = vadd.f32 %v913, %v1073
  %1075 = vdwg.mxu0
  %v1077 = vsel %vm914, %v249, 0
  %v1080 = vsel %vm914, %v251, 0
  %v1083 = vsel %vm914, %v254, 0
  %v1086 = vsel %vm914, %v256, 0
  %v1089 = vsel %vm914, %v259, 0
  %v1092 = vsel %vm914, %v261, 0
  %v1095 = vsel %vm914, %v264, 0
  %v1098 = vsel %vm914, %v266, 0
  %v1101 = vsel %vm914, %v269, 0
  %v1104 = vsel %vm914, %v271, 0
  %v1107 = vsel %vm914, %v274, 0
  %v1110 = vsel %vm914, %v276, 0
  %v1113 = vsel %vm914, %v279, 0
  %v1116 = vsel %vm914, %v281, 0
  %v1119 = vsel %vm914, %v284, 0
  %v1122 = vsel %vm914, %v286, 0
  %v1125 = vsel %vm914, %v493, 0
  %v1128 = vsel %vm914, %v495, 0
  %v1131 = vsel %vm914, %v498, 0
  %v1134 = vsel %vm914, %v500, 0
  %v1137 = vsel %vm914, %v503, 0
  %v1140 = vsel %vm914, %v505, 0
  %v1143 = vsel %vm914, %v508, 0
  %v1146 = vsel %vm914, %v510, 0
  %v1149 = vsel %vm914, %v513, 0
  %v1152 = vsel %vm914, %v515, 0
  %v1155 = vsel %vm914, %v518, 0
  %v1158 = vsel %vm914, %v520, 0
  %v1161 = vsel %vm914, %v523, 0
  %v1164 = vsel %vm914, %v525, 0
  %v1167 = vsel %vm914, %v528, 0
  %v1170 = vsel %vm914, %v530, 0
  %1172 = vmatpush.xpose.msra.mxu0 %v1170
  %1173 = vmatpush.xpose.msra.mxu0 %v1167
  %1174 = vmatpush.xpose.msra.mxu0 %v1164
  %1175 = vmatpush.xpose.msra.mxu0 %v1161
  %1176 = vmatpush.xpose.msra.mxu0 %v1158
  %1177 = vmatpush.xpose.msra.mxu0 %v1155
  %1178 = vmatpush.xpose.msra.mxu0 %v1152
  %1179 = vmatpush.xpose.msra.mxu0 %v1149
  %1180 = vmatpush.xpose.msra.mxu0 %v1146
  %1181 = vmatpush.xpose.msra.mxu0 %v1143
  %1182 = vmatpush.xpose.msra.mxu0 %v1140
  %1183 = vmatpush.xpose.msra.mxu0 %v1137
  %1184 = vmatpush.xpose.msra.mxu0 %v1134
  %1185 = vmatpush.xpose.msra.mxu0 %v1131
  %1186 = vmatpush.xpose.msra.mxu0 %v1128
  %1187 = vmatpush.xpose.msra.mxu0 %v1125
  %1188 = vmatmul.f32.gmra.mxu0 %v1077
  %v1189 = vpop.f32.mrf.mxu0
  %v1190 = vadd.f32 %v898, %v1189
  %1191 = vmatmul.f32.gmra.mxu0 %v1080
  %v1192 = vpop.f32.mrf.mxu0
  %v1193 = vadd.f32 %v899, %v1192
  %1194 = vmatmul.f32.gmra.mxu0 %v1083
  %v1195 = vpop.f32.mrf.mxu0
  %v1196 = vadd.f32 %v900, %v1195
  %1197 = vmatmul.f32.gmra.mxu0 %v1086
  %v1198 = vpop.f32.mrf.mxu0
  %v1199 = vadd.f32 %v901, %v1198
  %1200 = vmatmul.f32.gmra.mxu0 %v1089
  %v1201 = vpop.f32.mrf.mxu0
  %v1202 = vadd.f32 %v902, %v1201
  %1203 = vmatmul.f32.gmra.mxu0 %v1092
  %v1204 = vpop.f32.mrf.mxu0
  %v1205 = vadd.f32 %v903, %v1204
  %1206 = vmatmul.f32.gmra.mxu0 %v1095
  %v1207 = vpop.f32.mrf.mxu0
  %v1208 = vadd.f32 %v904, %v1207
  %1209 = vmatmul.f32.gmra.mxu0 %v1098
  %v1210 = vpop.f32.mrf.mxu0
  %v1211 = vadd.f32 %v905, %v1210
  %1212 = vmatmul.f32.gmra.mxu0 %v1101
  %v1213 = vpop.f32.mrf.mxu0
  %v1214 = vadd.f32 %v906, %v1213
  %1215 = vmatmul.f32.gmra.mxu0 %v1104
  %v1216 = vpop.f32.mrf.mxu0
  %v1217 = vadd.f32 %v907, %v1216
  %1218 = vmatmul.f32.gmra.mxu0 %v1107
  %v1219 = vpop.f32.mrf.mxu0
  %v1220 = vadd.f32 %v908, %v1219
  %1221 = vmatmul.f32.gmra.mxu0 %v1110
  %v1222 = vpop.f32.mrf.mxu0
  %v1223 = vadd.f32 %v909, %v1222
  %1224 = vmatmul.f32.gmra.mxu0 %v1113
  %v1225 = vpop.f32.mrf.mxu0
  %v1226 = vadd.f32 %v910, %v1225
  %1227 = vmatmul.f32.gmra.mxu0 %v1116
  %v1228 = vpop.f32.mrf.mxu0
  %v1229 = vadd.f32 %v911, %v1228
  %1230 = vmatmul.f32.gmra.mxu0 %v1119
  %v1231 = vpop.f32.mrf.mxu0
  %v1232 = vadd.f32 %v912, %v1231
  %1233 = vmatmul.f32.gmra.mxu0 %v1122
  %v1234 = vpop.f32.mrf.mxu0
  %v1235 = vadd.f32 %v913, %v1234
  %1236 = vdwg.mxu0
  %v1238 = vsel %vm914, %v310, 0
  %v1241 = vsel %vm914, %v312, 0
  %v1244 = vsel %vm914, %v315, 0
  %v1247 = vsel %vm914, %v317, 0
  %v1250 = vsel %vm914, %v320, 0
  %v1253 = vsel %vm914, %v322, 0
  %v1256 = vsel %vm914, %v325, 0
  %v1259 = vsel %vm914, %v327, 0
  %v1262 = vsel %vm914, %v330, 0
  %v1265 = vsel %vm914, %v332, 0
  %v1268 = vsel %vm914, %v335, 0
  %v1271 = vsel %vm914, %v337, 0
  %v1274 = vsel %vm914, %v340, 0
  %v1277 = vsel %vm914, %v342, 0
  %v1280 = vsel %vm914, %v345, 0
  %v1283 = vsel %vm914, %v347, 0
  %v1286 = vsel %vm914, %v554, 0
  %v1289 = vsel %vm914, %v556, 0
  %v1292 = vsel %vm914, %v559, 0
  %v1295 = vsel %vm914, %v561, 0
  %v1298 = vsel %vm914, %v564, 0
  %v1301 = vsel %vm914, %v566, 0
  %v1304 = vsel %vm914, %v569, 0
  %v1307 = vsel %vm914, %v571, 0
  %v1310 = vsel %vm914, %v574, 0
  %v1313 = vsel %vm914, %v576, 0
  %v1316 = vsel %vm914, %v579, 0
  %v1319 = vsel %vm914, %v581, 0
  %v1322 = vsel %vm914, %v584, 0
  %v1325 = vsel %vm914, %v586, 0
  %v1328 = vsel %vm914, %v589, 0
  %v1331 = vsel %vm914, %v591, 0
  %1333 = vmatpush.xpose.msra.mxu0 %v1331
  %1334 = vmatpush.xpose.msra.mxu0 %v1328
  %1335 = vmatpush.xpose.msra.mxu0 %v1325
  %1336 = vmatpush.xpose.msra.mxu0 %v1322
  %1337 = vmatpush.xpose.msra.mxu0 %v1319
  %1338 = vmatpush.xpose.msra.mxu0 %v1316
  %1339 = vmatpush.xpose.msra.mxu0 %v1313
  %1340 = vmatpush.xpose.msra.mxu0 %v1310
  %1341 = vmatpush.xpose.msra.mxu0 %v1307
  %1342 = vmatpush.xpose.msra.mxu0 %v1304
  %1343 = vmatpush.xpose.msra.mxu0 %v1301
  %1344 = vmatpush.xpose.msra.mxu0 %v1298
  %1345 = vmatpush.xpose.msra.mxu0 %v1295
  %1346 = vmatpush.xpose.msra.mxu0 %v1292
  %1347 = vmatpush.xpose.msra.mxu0 %v1289
  %1348 = vmatpush.xpose.msra.mxu0 %v1286
  %1349 = vmatmul.f32.gmra.mxu0 %v1238
  %v1350 = vpop.f32.mrf.mxu0
  %v1351 = vadd.f32 %v898, %v1350
  %1352 = vmatmul.f32.gmra.mxu0 %v1241
  %v1353 = vpop.f32.mrf.mxu0
  %v1354 = vadd.f32 %v899, %v1353
  %1355 = vmatmul.f32.gmra.mxu0 %v1244
  %v1356 = vpop.f32.mrf.mxu0
  %v1357 = vadd.f32 %v900, %v1356
  %1358 = vmatmul.f32.gmra.mxu0 %v1247
  %v1359 = vpop.f32.mrf.mxu0
  %v1360 = vadd.f32 %v901, %v1359
  %1361 = vmatmul.f32.gmra.mxu0 %v1250
  %v1362 = vpop.f32.mrf.mxu0
  %v1363 = vadd.f32 %v902, %v1362
  %1364 = vmatmul.f32.gmra.mxu0 %v1253
  %v1365 = vpop.f32.mrf.mxu0
  %v1366 = vadd.f32 %v903, %v1365
  %1367 = vmatmul.f32.gmra.mxu0 %v1256
  %v1368 = vpop.f32.mrf.mxu0
  %v1369 = vadd.f32 %v904, %v1368
  %1370 = vmatmul.f32.gmra.mxu0 %v1259
  %v1371 = vpop.f32.mrf.mxu0
  %v1372 = vadd.f32 %v905, %v1371
  %1373 = vmatmul.f32.gmra.mxu0 %v1262
  %v1374 = vpop.f32.mrf.mxu0
  %v1375 = vadd.f32 %v906, %v1374
  %1376 = vmatmul.f32.gmra.mxu0 %v1265
  %v1377 = vpop.f32.mrf.mxu0
  %v1378 = vadd.f32 %v907, %v1377
  %1379 = vmatmul.f32.gmra.mxu0 %v1268
  %v1380 = vpop.f32.mrf.mxu0
  %v1381 = vadd.f32 %v908, %v1380
  %1382 = vmatmul.f32.gmra.mxu0 %v1271
  %v1383 = vpop.f32.mrf.mxu0
  %v1384 = vadd.f32 %v909, %v1383
  %1385 = vmatmul.f32.gmra.mxu0 %v1274
  %v1386 = vpop.f32.mrf.mxu0
  %v1387 = vadd.f32 %v910, %v1386
  %1388 = vmatmul.f32.gmra.mxu0 %v1277
  %v1389 = vpop.f32.mrf.mxu0
  %v1390 = vadd.f32 %v911, %v1389
  %1391 = vmatmul.f32.gmra.mxu0 %v1280
  %v1392 = vpop.f32.mrf.mxu0
  %v1393 = vadd.f32 %v912, %v1392
  %1394 = vmatmul.f32.gmra.mxu0 %v1283
  %v1395 = vpop.f32.mrf.mxu0
  %v1396 = vadd.f32 %v913, %v1395
  %1397 = vdwg.mxu0
  %v1399 = vsel %vm914, %v371, 0
  %v1402 = vsel %vm914, %v373, 0
  %v1405 = vsel %vm914, %v376, 0
  %v1408 = vsel %vm914, %v378, 0
  %v1411 = vsel %vm914, %v381, 0
  %v1414 = vsel %vm914, %v383, 0
  %v1417 = vsel %vm914, %v386, 0
  %v1420 = vsel %vm914, %v388, 0
  %v1423 = vsel %vm914, %v391, 0
  %v1426 = vsel %vm914, %v393, 0
  %v1429 = vsel %vm914, %v396, 0
  %v1432 = vsel %vm914, %v398, 0
  %v1435 = vsel %vm914, %v401, 0
  %v1438 = vsel %vm914, %v403, 0
  %v1441 = vsel %vm914, %v406, 0
  %v1444 = vsel %vm914, %v408, 0
  %v1447 = vsel %vm914, %v615, 0
  %v1450 = vsel %vm914, %v617, 0
  %v1453 = vsel %vm914, %v620, 0
  %v1456 = vsel %vm914, %v622, 0
  %v1459 = vsel %vm914, %v625, 0
  %v1462 = vsel %vm914, %v627, 0
  %v1465 = vsel %vm914, %v630, 0
  %v1468 = vsel %vm914, %v632, 0
  %v1471 = vsel %vm914, %v635, 0
  %v1474 = vsel %vm914, %v637, 0
  %v1477 = vsel %vm914, %v640, 0
  %v1480 = vsel %vm914, %v642, 0
  %v1483 = vsel %vm914, %v645, 0
  %v1486 = vsel %vm914, %v647, 0
  %v1489 = vsel %vm914, %v650, 0
  %v1492 = vsel %vm914, %v652, 0
  %1494 = vmatpush.xpose.msra.mxu0 %v1492
  %1495 = vmatpush.xpose.msra.mxu0 %v1489
  %1496 = vmatpush.xpose.msra.mxu0 %v1486
  %1497 = vmatpush.xpose.msra.mxu0 %v1483
  %1498 = vmatpush.xpose.msra.mxu0 %v1480
  %1499 = vmatpush.xpose.msra.mxu0 %v1477
  %1500 = vmatpush.xpose.msra.mxu0 %v1474
  %1501 = vmatpush.xpose.msra.mxu0 %v1471
  %1502 = vmatpush.xpose.msra.mxu0 %v1468
  %1503 = vmatpush.xpose.msra.mxu0 %v1465
  %1504 = vmatpush.xpose.msra.mxu0 %v1462
  %1505 = vmatpush.xpose.msra.mxu0 %v1459
  %1506 = vmatpush.xpose.msra.mxu0 %v1456
  %1507 = vmatpush.xpose.msra.mxu0 %v1453
  %1508 = vmatpush.xpose.msra.mxu0 %v1450
  %1509 = vmatpush.xpose.msra.mxu0 %v1447
  %1510 = vmatmul.f32.gmra.mxu0 %v1399
  %v1511 = vpop.f32.mrf.mxu0
  %v1512 = vadd.f32 %v898, %v1511
  %1513 = vmatmul.f32.gmra.mxu0 %v1402
  %v1514 = vpop.f32.mrf.mxu0
  %v1515 = vadd.f32 %v899, %v1514
  %1516 = vmatmul.f32.gmra.mxu0 %v1405
  %v1517 = vpop.f32.mrf.mxu0
  %v1518 = vadd.f32 %v900, %v1517
  %1519 = vmatmul.f32.gmra.mxu0 %v1408
  %v1520 = vpop.f32.mrf.mxu0
  %v1521 = vadd.f32 %v901, %v1520
  %1522 = vmatmul.f32.gmra.mxu0 %v1411
  %v1523 = vpop.f32.mrf.mxu0
  %v1524 = vadd.f32 %v902, %v1523
  %1525 = vmatmul.f32.gmra.mxu0 %v1414
  %v1526 = vpop.f32.mrf.mxu0
  %v1527 = vadd.f32 %v903, %v1526
  %1528 = vmatmul.f32.gmra.mxu0 %v1417
  %v1529 = vpop.f32.mrf.mxu0
  %v1530 = vadd.f32 %v904, %v1529
  %1531 = vmatmul.f32.gmra.mxu0 %v1420
  %v1532 = vpop.f32.mrf.mxu0
  %v1533 = vadd.f32 %v905, %v1532
  %1534 = vmatmul.f32.gmra.mxu0 %v1423
  %v1535 = vpop.f32.mrf.mxu0
  %v1536 = vadd.f32 %v906, %v1535
  %1537 = vmatmul.f32.gmra.mxu0 %v1426
  %v1538 = vpop.f32.mrf.mxu0
  %v1539 = vadd.f32 %v907, %v1538
  %1540 = vmatmul.f32.gmra.mxu0 %v1429
  %v1541 = vpop.f32.mrf.mxu0
  %v1542 = vadd.f32 %v908, %v1541
  %1543 = vmatmul.f32.gmra.mxu0 %v1432
  %v1544 = vpop.f32.mrf.mxu0
  %v1545 = vadd.f32 %v909, %v1544
  %1546 = vmatmul.f32.gmra.mxu0 %v1435
  %v1547 = vpop.f32.mrf.mxu0
  %v1548 = vadd.f32 %v910, %v1547
  %1549 = vmatmul.f32.gmra.mxu0 %v1438
  %v1550 = vpop.f32.mrf.mxu0
  %v1551 = vadd.f32 %v911, %v1550
  %1552 = vmatmul.f32.gmra.mxu0 %v1441
  %v1553 = vpop.f32.mrf.mxu0
  %v1554 = vadd.f32 %v912, %v1553
  %1555 = vmatmul.f32.gmra.mxu0 %v1444
  %v1556 = vpop.f32.mrf.mxu0
  %v1557 = vadd.f32 %v913, %v1556
  %1558 = vdwg.mxu0
  %1559 = vmax.xlane.f32.xlu0 %v1029
  %v1560 = vpop.xlane.xlu0 %1559
  %1561 = vmax.xlane.f32.xlu0 %v1032
  %v1562 = vpop.xlane.xlu0 %1561
  %1563 = vmax.xlane.f32.xlu0 %v1035
  %v1564 = vpop.xlane.xlu0 %1563
  %1565 = vmax.xlane.f32.xlu0 %v1038
  %v1566 = vpop.xlane.xlu0 %1565
  %1567 = vmax.xlane.f32.xlu0 %v1041
  %v1568 = vpop.xlane.xlu0 %1567
  %1569 = vmax.xlane.f32.xlu0 %v1044
  %v1570 = vpop.xlane.xlu0 %1569
  %1571 = vmax.xlane.f32.xlu0 %v1047
  %v1572 = vpop.xlane.xlu0 %1571
  %1573 = vmax.xlane.f32.xlu0 %v1050
  %v1574 = vpop.xlane.xlu0 %1573
  %1575 = vmax.xlane.f32.xlu0 %v1053
  %v1576 = vpop.xlane.xlu0 %1575
  %1577 = vmax.xlane.f32.xlu0 %v1056
  %v1578 = vpop.xlane.xlu0 %1577
  %1579 = vmax.xlane.f32.xlu0 %v1059
  %v1580 = vpop.xlane.xlu0 %1579
  %1581 = vmax.xlane.f32.xlu0 %v1062
  %v1582 = vpop.xlane.xlu0 %1581
  %1583 = vmax.xlane.f32.xlu0 %v1065
  %v1584 = vpop.xlane.xlu0 %1583
  %1585 = vmax.xlane.f32.xlu0 %v1068
  %v1586 = vpop.xlane.xlu0 %1585
  %1587 = vmax.xlane.f32.xlu0 %v1071
  %v1588 = vpop.xlane.xlu0 %1587
  %1589 = vmax.xlane.f32.xlu0 %v1074
  %v1590 = vpop.xlane.xlu0 %1589
  %1591 = vmax.xlane.f32.xlu0 %v1190
  %v1592 = vpop.xlane.xlu0 %1591
  %1593 = vmax.xlane.f32.xlu0 %v1193
  %v1594 = vpop.xlane.xlu0 %1593
  %1595 = vmax.xlane.f32.xlu0 %v1196
  %v1596 = vpop.xlane.xlu0 %1595
  %1597 = vmax.xlane.f32.xlu0 %v1199
  %v1598 = vpop.xlane.xlu0 %1597
  %1599 = vmax.xlane.f32.xlu0 %v1202
  %v1600 = vpop.xlane.xlu0 %1599
  %1601 = vmax.xlane.f32.xlu0 %v1205
  %v1602 = vpop.xlane.xlu0 %1601
  %1603 = vmax.xlane.f32.xlu0 %v1208
  %v1604 = vpop.xlane.xlu0 %1603
  %1605 = vmax.xlane.f32.xlu0 %v1211
  %v1606 = vpop.xlane.xlu0 %1605
  %1607 = vmax.xlane.f32.xlu0 %v1214
  %v1608 = vpop.xlane.xlu0 %1607
  %1609 = vmax.xlane.f32.xlu0 %v1217
  %v1610 = vpop.xlane.xlu0 %1609
  %1611 = vmax.xlane.f32.xlu0 %v1220
  %v1612 = vpop.xlane.xlu0 %1611
  %1613 = vmax.xlane.f32.xlu0 %v1223
  %v1614 = vpop.xlane.xlu0 %1613
  %1615 = vmax.xlane.f32.xlu0 %v1226
  %v1616 = vpop.xlane.xlu0 %1615
  %1617 = vmax.xlane.f32.xlu0 %v1229
  %v1618 = vpop.xlane.xlu0 %1617
  %1619 = vmax.xlane.f32.xlu0 %v1232
  %v1620 = vpop.xlane.xlu0 %1619
  %1621 = vmax.xlane.f32.xlu0 %v1235
  %v1622 = vpop.xlane.xlu0 %1621
  %1623 = vmax.xlane.f32.xlu0 %v1351
  %v1624 = vpop.xlane.xlu0 %1623
  %1625 = vmax.xlane.f32.xlu0 %v1354
  %v1626 = vpop.xlane.xlu0 %1625
  %1627 = vmax.xlane.f32.xlu0 %v1357
  %v1628 = vpop.xlane.xlu0 %1627
  %1629 = vmax.xlane.f32.xlu0 %v1360
  %v1630 = vpop.xlane.xlu0 %1629
  %1631 = vmax.xlane.f32.xlu0 %v1363
  %v1632 = vpop.xlane.xlu0 %1631
  %1633 = vmax.xlane.f32.xlu0 %v1366
  %v1634 = vpop.xlane.xlu0 %1633
  %1635 = vmax.xlane.f32.xlu0 %v1369
  %v1636 = vpop.xlane.xlu0 %1635
  %1637 = vmax.xlane.f32.xlu0 %v1372
  %v1638 = vpop.xlane.xlu0 %1637
  %1639 = vmax.xlane.f32.xlu0 %v1375
  %v1640 = vpop.xlane.xlu0 %1639
  %1641 = vmax.xlane.f32.xlu0 %v1378
  %v1642 = vpop.xlane.xlu0 %1641
  %1643 = vmax.xlane.f32.xlu0 %v1381
  %v1644 = vpop.xlane.xlu0 %1643
  %1645 = vmax.xlane.f32.xlu0 %v1384
  %v1646 = vpop.xlane.xlu0 %1645
  %1647 = vmax.xlane.f32.xlu0 %v1387
  %v1648 = vpop.xlane.xlu0 %1647
  %1649 = vmax.xlane.f32.xlu0 %v1390
  %v1650 = vpop.xlane.xlu0 %1649
  %1651 = vmax.xlane.f32.xlu0 %v1393
  %v1652 = vpop.xlane.xlu0 %1651
  %1653 = vmax.xlane.f32.xlu0 %v1396
  %v1654 = vpop.xlane.xlu0 %1653
  %1655 = vmax.xlane.f32.xlu0 %v1512
  %v1656 = vpop.xlane.xlu0 %1655
  %1657 = vmax.xlane.f32.xlu0 %v1515
  %v1658 = vpop.xlane.xlu0 %1657
  %1659 = vmax.xlane.f32.xlu0 %v1518
  %v1660 = vpop.xlane.xlu0 %1659
  %1661 = vmax.xlane.f32.xlu0 %v1521
  %v1662 = vpop.xlane.xlu0 %1661
  %1663 = vmax.xlane.f32.xlu0 %v1524
  %v1664 = vpop.xlane.xlu0 %1663
  %1665 = vmax.xlane.f32.xlu0 %v1527
  %v1666 = vpop.xlane.xlu0 %1665
  %1667 = vmax.xlane.f32.xlu0 %v1530
  %v1668 = vpop.xlane.xlu0 %1667
  %1669 = vmax.xlane.f32.xlu0 %v1533
  %v1670 = vpop.xlane.xlu0 %1669
  %1671 = vmax.xlane.f32.xlu0 %v1536
  %v1672 = vpop.xlane.xlu0 %1671
  %1673 = vmax.xlane.f32.xlu0 %v1539
  %v1674 = vpop.xlane.xlu0 %1673
  %1675 = vmax.xlane.f32.xlu0 %v1542
  %v1676 = vpop.xlane.xlu0 %1675
  %1677 = vmax.xlane.f32.xlu0 %v1545
  %v1678 = vpop.xlane.xlu0 %1677
  %1679 = vmax.xlane.f32.xlu0 %v1548
  %v1680 = vpop.xlane.xlu0 %1679
  %1681 = vmax.xlane.f32.xlu0 %v1551
  %v1682 = vpop.xlane.xlu0 %1681
  %1683 = vmax.xlane.f32.xlu0 %v1554
  %v1684 = vpop.xlane.xlu0 %1683
  %1685 = vmax.xlane.f32.xlu0 %v1557
  %v1686 = vpop.xlane.xlu0 %1685
  %v1687 = vsub.f32 %v1029, %v1560
  %v1688 = vsub.f32 %v1032, %v1562
  %v1689 = vsub.f32 %v1035, %v1564
  %v1690 = vsub.f32 %v1038, %v1566
  %v1691 = vsub.f32 %v1041, %v1568
  %v1692 = vsub.f32 %v1044, %v1570
  %v1693 = vsub.f32 %v1047, %v1572
  %v1694 = vsub.f32 %v1050, %v1574
  %v1695 = vsub.f32 %v1053, %v1576
  %v1696 = vsub.f32 %v1056, %v1578
  %v1697 = vsub.f32 %v1059, %v1580
  %v1698 = vsub.f32 %v1062, %v1582
  %v1699 = vsub.f32 %v1065, %v1584
  %v1700 = vsub.f32 %v1068, %v1586
  %v1701 = vsub.f32 %v1071, %v1588
  %v1702 = vsub.f32 %v1074, %v1590
  %v1703 = vsub.f32 %v1190, %v1592
  %v1704 = vsub.f32 %v1193, %v1594
  %v1705 = vsub.f32 %v1196, %v1596
  %v1706 = vsub.f32 %v1199, %v1598
  %v1707 = vsub.f32 %v1202, %v1600
  %v1708 = vsub.f32 %v1205, %v1602
  %v1709 = vsub.f32 %v1208, %v1604
  %v1710 = vsub.f32 %v1211, %v1606
  %v1711 = vsub.f32 %v1214, %v1608
  %v1712 = vsub.f32 %v1217, %v1610
  %v1713 = vsub.f32 %v1220, %v1612
  %v1714 = vsub.f32 %v1223, %v1614
  %v1715 = vsub.f32 %v1226, %v1616
  %v1716 = vsub.f32 %v1229, %v1618
  %v1717 = vsub.f32 %v1232, %v1620
  %v1718 = vsub.f32 %v1235, %v1622
  %v1719 = vsub.f32 %v1351, %v1624
  %v1720 = vsub.f32 %v1354, %v1626
  %v1721 = vsub.f32 %v1357, %v1628
  %v1722 = vsub.f32 %v1360, %v1630
  %v1723 = vsub.f32 %v1363, %v1632
  %v1724 = vsub.f32 %v1366, %v1634
  %v1725 = vsub.f32 %v1369, %v1636
  %v1726 = vsub.f32 %v1372, %v1638
  %v1727 = vsub.f32 %v1375, %v1640
  %v1728 = vsub.f32 %v1378, %v1642
  %v1729 = vsub.f32 %v1381, %v1644
  %v1730 = vsub.f32 %v1384, %v1646
  %v1731 = vsub.f32 %v1387, %v1648
  %v1732 = vsub.f32 %v1390, %v1650
  %v1733 = vsub.f32 %v1393, %v1652
  %v1734 = vsub.f32 %v1396, %v1654
  %v1735 = vsub.f32 %v1512, %v1656
  %v1736 = vsub.f32 %v1515, %v1658
  %v1737 = vsub.f32 %v1518, %v1660
  %v1738 = vsub.f32 %v1521, %v1662
  %v1739 = vsub.f32 %v1524, %v1664
  %v1740 = vsub.f32 %v1527, %v1666
  %v1741 = vsub.f32 %v1530, %v1668
  %v1742 = vsub.f32 %v1533, %v1670
  %v1743 = vsub.f32 %v1536, %v1672
  %v1744 = vsub.f32 %v1539, %v1674
  %v1745 = vsub.f32 %v1542, %v1676
  %v1746 = vsub.f32 %v1545, %v1678
  %v1747 = vsub.f32 %v1548, %v1680
  %v1748 = vsub.f32 %v1551, %v1682
  %v1749 = vsub.f32 %v1554, %v1684
  %v1750 = vsub.f32 %v1557, %v1686
  %v1751 = vmul.f32 %v1687, 1.442695
  %v1752 = vpow.pop %v1751
  %v1753 = vmul.f32 %v1688, 1.442695
  %v1754 = vpow.pop %v1753
  %v1755 = vmul.f32 %v1689, 1.442695
  %v1756 = vpow.pop %v1755
  %v1757 = vmul.f32 %v1690, 1.442695
  %v1758 = vpow.pop %v1757
  %v1759 = vmul.f32 %v1691, 1.442695
  %v1760 = vpow.pop %v1759
  %v1761 = vmul.f32 %v1692, 1.442695
  %v1762 = vpow.pop %v1761
  %v1763 = vmul.f32 %v1693, 1.442695
  %v1764 = vpow.pop %v1763
  %v1765 = vmul.f32 %v1694, 1.442695
  %v1766 = vpow.pop %v1765
  %v1767 = vmul.f32 %v1695, 1.442695
  %v1768 = vpow.pop %v1767
  %v1769 = vmul.f32 %v1696, 1.442695
  %v1770 = vpow.pop %v1769
  %v1771 = vmul.f32 %v1697, 1.442695
  %v1772 = vpow.pop %v1771
  %v1773 = vmul.f32 %v1698, 1.442695
  %v1774 = vpow.pop %v1773
  %v1775 = vmul.f32 %v1699, 1.442695
  %v1776 = vpow.pop %v1775
  %v1777 = vmul.f32 %v1700, 1.442695
  %v1778 = vpow.pop %v1777
  %v1779 = vmul.f32 %v1701, 1.442695
  %v1780 = vpow.pop %v1779
  %v1781 = vmul.f32 %v1702, 1.442695
  %v1782 = vpow.pop %v1781
  %v1783 = vmul.f32 %v1703, 1.442695
  %v1784 = vpow.pop %v1783
  %v1785 = vmul.f32 %v1704, 1.442695
  %v1786 = vpow.pop %v1785
  %v1787 = vmul.f32 %v1705, 1.442695
  %v1788 = vpow.pop %v1787
  %v1789 = vmul.f32 %v1706, 1.442695
  %v1790 = vpow.pop %v1789
  %v1791 = vmul.f32 %v1707, 1.442695
  %v1792 = vpow.pop %v1791
  %v1793 = vmul.f32 %v1708, 1.442695
  %v1794 = vpow.pop %v1793
  %v1795 = vmul.f32 %v1709, 1.442695
  %v1796 = vpow.pop %v1795
  %v1797 = vmul.f32 %v1710, 1.442695
  %v1798 = vpow.pop %v1797
  %v1799 = vmul.f32 %v1711, 1.442695
  %v1800 = vpow.pop %v1799
  %v1801 = vmul.f32 %v1712, 1.442695
  %v1802 = vpow.pop %v1801
  %v1803 = vmul.f32 %v1713, 1.442695
  %v1804 = vpow.pop %v1803
  %v1805 = vmul.f32 %v1714, 1.442695
  %v1806 = vpow.pop %v1805
  %v1807 = vmul.f32 %v1715, 1.442695
  %v1808 = vpow.pop %v1807
  %v1809 = vmul.f32 %v1716, 1.442695
  %v1810 = vpow.pop %v1809
  %v1811 = vmul.f32 %v1717, 1.442695
  %v1812 = vpow.pop %v1811
  %v1813 = vmul.f32 %v1718, 1.442695
  %v1814 = vpow.pop %v1813
  %v1815 = vmul.f32 %v1719, 1.442695
  %v1816 = vpow.pop %v1815
  %v1817 = vmul.f32 %v1720, 1.442695
  %v1818 = vpow.pop %v1817
  %v1819 = vmul.f32 %v1721, 1.442695
  %v1820 = vpow.pop %v1819
  %v1821 = vmul.f32 %v1722, 1.442695
  %v1822 = vpow.pop %v1821
  %v1823 = vmul.f32 %v1723, 1.442695
  %v1824 = vpow.pop %v1823
  %v1825 = vmul.f32 %v1724, 1.442695
  %v1826 = vpow.pop %v1825
  %v1827 = vmul.f32 %v1725, 1.442695
  %v1828 = vpow.pop %v1827
  %v1829 = vmul.f32 %v1726, 1.442695
  %v1830 = vpow.pop %v1829
  %v1831 = vmul.f32 %v1727, 1.442695
  %v1832 = vpow.pop %v1831
  %v1833 = vmul.f32 %v1728, 1.442695
  %v1834 = vpow.pop %v1833
  %v1835 = vmul.f32 %v1729, 1.442695
  %v1836 = vpow.pop %v1835
  %v1837 = vmul.f32 %v1730, 1.442695
  %v1838 = vpow.pop %v1837
  %v1839 = vmul.f32 %v1731, 1.442695
  %v1840 = vpow.pop %v1839
  %v1841 = vmul.f32 %v1732, 1.442695
  %v1842 = vpow.pop %v1841
  %v1843 = vmul.f32 %v1733, 1.442695
  %v1844 = vpow.pop %v1843
  %v1845 = vmul.f32 %v1734, 1.442695
  %v1846 = vpow.pop %v1845
  %v1847 = vmul.f32 %v1735, 1.442695
  %v1848 = vpow.pop %v1847
  %v1849 = vmul.f32 %v1736, 1.442695
  %v1850 = vpow.pop %v1849
  %v1851 = vmul.f32 %v1737, 1.442695
  %v1852 = vpow.pop %v1851
  %v1853 = vmul.f32 %v1738, 1.442695
  %v1854 = vpow.pop %v1853
  %v1855 = vmul.f32 %v1739, 1.442695
  %v1856 = vpow.pop %v1855
  %v1857 = vmul.f32 %v1740, 1.442695
  %v1858 = vpow.pop %v1857
  %v1859 = vmul.f32 %v1741, 1.442695
  %v1860 = vpow.pop %v1859
  %v1861 = vmul.f32 %v1742, 1.442695
  %v1862 = vpow.pop %v1861
  %v1863 = vmul.f32 %v1743, 1.442695
  %v1864 = vpow.pop %v1863
  %v1865 = vmul.f32 %v1744, 1.442695
  %v1866 = vpow.pop %v1865
  %v1867 = vmul.f32 %v1745, 1.442695
  %v1868 = vpow.pop %v1867
  %v1869 = vmul.f32 %v1746, 1.442695
  %v1870 = vpow.pop %v1869
  %v1871 = vmul.f32 %v1747, 1.442695
  %v1872 = vpow.pop %v1871
  %v1873 = vmul.f32 %v1748, 1.442695
  %v1874 = vpow.pop %v1873
  %v1875 = vmul.f32 %v1749, 1.442695
  %v1876 = vpow.pop %v1875
  %v1877 = vmul.f32 %v1750, 1.442695
  %v1878 = vpow.pop %v1877
  %1879 = vadd.xlane.f32.xlu0 %v1752
  %v1880 = vpop.xlane.xlu0 %1879
  %1881 = vadd.xlane.f32.xlu0 %v1754
  %v1882 = vpop.xlane.xlu0 %1881
  %1883 = vadd.xlane.f32.xlu0 %v1756
  %v1884 = vpop.xlane.xlu0 %1883
  %1885 = vadd.xlane.f32.xlu0 %v1758
  %v1886 = vpop.xlane.xlu0 %1885
  %1887 = vadd.xlane.f32.xlu0 %v1760
  %v1888 = vpop.xlane.xlu0 %1887
  %1889 = vadd.xlane.f32.xlu0 %v1762
  %v1890 = vpop.xlane.xlu0 %1889
  %1891 = vadd.xlane.f32.xlu0 %v1764
  %v1892 = vpop.xlane.xlu0 %1891
  %1893 = vadd.xlane.f32.xlu0 %v1766
  %v1894 = vpop.xlane.xlu0 %1893
  %1895 = vadd.xlane.f32.xlu0 %v1768
  %v1896 = vpop.xlane.xlu0 %1895
  %1897 = vadd.xlane.f32.xlu0 %v1770
  %v1898 = vpop.xlane.xlu0 %1897
  %1899 = vadd.xlane.f32.xlu0 %v1772
  %v1900 = vpop.xlane.xlu0 %1899
  %1901 = vadd.xlane.f32.xlu0 %v1774
  %v1902 = vpop.xlane.xlu0 %1901
  %1903 = vadd.xlane.f32.xlu0 %v1776
  %v1904 = vpop.xlane.xlu0 %1903
  %1905 = vadd.xlane.f32.xlu0 %v1778
  %v1906 = vpop.xlane.xlu0 %1905
  %1907 = vadd.xlane.f32.xlu0 %v1780
  %v1908 = vpop.xlane.xlu0 %1907
  %1909 = vadd.xlane.f32.xlu0 %v1782
  %v1910 = vpop.xlane.xlu0 %1909
  %1911 = vadd.xlane.f32.xlu0 %v1784
  %v1912 = vpop.xlane.xlu0 %1911
  %1913 = vadd.xlane.f32.xlu0 %v1786
  %v1914 = vpop.xlane.xlu0 %1913
  %1915 = vadd.xlane.f32.xlu0 %v1788
  %v1916 = vpop.xlane.xlu0 %1915
  %1917 = vadd.xlane.f32.xlu0 %v1790
  %v1918 = vpop.xlane.xlu0 %1917
  %1919 = vadd.xlane.f32.xlu0 %v1792
  %v1920 = vpop.xlane.xlu0 %1919
  %1921 = vadd.xlane.f32.xlu0 %v1794
  %v1922 = vpop.xlane.xlu0 %1921
  %1923 = vadd.xlane.f32.xlu0 %v1796
  %v1924 = vpop.xlane.xlu0 %1923
  %1925 = vadd.xlane.f32.xlu0 %v1798
  %v1926 = vpop.xlane.xlu0 %1925
  %1927 = vadd.xlane.f32.xlu0 %v1800
  %v1928 = vpop.xlane.xlu0 %1927
  %1929 = vadd.xlane.f32.xlu0 %v1802
  %v1930 = vpop.xlane.xlu0 %1929
  %1931 = vadd.xlane.f32.xlu0 %v1804
  %v1932 = vpop.xlane.xlu0 %1931
  %1933 = vadd.xlane.f32.xlu0 %v1806
  %v1934 = vpop.xlane.xlu0 %1933
  %1935 = vadd.xlane.f32.xlu0 %v1808
  %v1936 = vpop.xlane.xlu0 %1935
  %1937 = vadd.xlane.f32.xlu0 %v1810
  %v1938 = vpop.xlane.xlu0 %1937
  %1939 = vadd.xlane.f32.xlu0 %v1812
  %v1940 = vpop.xlane.xlu0 %1939
  %1941 = vadd.xlane.f32.xlu0 %v1814
  %v1942 = vpop.xlane.xlu0 %1941
  %1943 = vadd.xlane.f32.xlu0 %v1816
  %v1944 = vpop.xlane.xlu0 %1943
  %1945 = vadd.xlane.f32.xlu0 %v1818
  %v1946 = vpop.xlane.xlu0 %1945
  %1947 = vadd.xlane.f32.xlu0 %v1820
  %v1948 = vpop.xlane.xlu0 %1947
  %1949 = vadd.xlane.f32.xlu0 %v1822
  %v1950 = vpop.xlane.xlu0 %1949
  %1951 = vadd.xlane.f32.xlu0 %v1824
  %v1952 = vpop.xlane.xlu0 %1951
  %1953 = vadd.xlane.f32.xlu0 %v1826
  %v1954 = vpop.xlane.xlu0 %1953
  %1955 = vadd.xlane.f32.xlu0 %v1828
  %v1956 = vpop.xlane.xlu0 %1955
  %1957 = vadd.xlane.f32.xlu0 %v1830
  %v1958 = vpop.xlane.xlu0 %1957
  %1959 = vadd.xlane.f32.xlu0 %v1832
  %v1960 = vpop.xlane.xlu0 %1959
  %1961 = vadd.xlane.f32.xlu0 %v1834
  %v1962 = vpop.xlane.xlu0 %1961
  %1963 = vadd.xlane.f32.xlu0 %v1836
  %v1964 = vpop.xlane.xlu0 %1963
  %1965 = vadd.xlane.f32.xlu0 %v1838
  %v1966 = vpop.xlane.xlu0 %1965
  %1967 = vadd.xlane.f32.xlu0 %v1840
  %v1968 = vpop.xlane.xlu0 %1967
  %1969 = vadd.xlane.f32.xlu0 %v1842
  %v1970 = vpop.xlane.xlu0 %1969
  %1971 = vadd.xlane.f32.xlu0 %v1844
  %v1972 = vpop.xlane.xlu0 %1971
  %1973 = vadd.xlane.f32.xlu0 %v1846
  %v1974 = vpop.xlane.xlu0 %1973
  %1975 = vadd.xlane.f32.xlu0 %v1848
  %v1976 = vpop.xlane.xlu0 %1975
  %1977 = vadd.xlane.f32.xlu0 %v1850
  %v1978 = vpop.xlane.xlu0 %1977
  %1979 = vadd.xlane.f32.xlu0 %v1852
  %v1980 = vpop.xlane.xlu0 %1979
  %1981 = vadd.xlane.f32.xlu0 %v1854
  %v1982 = vpop.xlane.xlu0 %1981
  %1983 = vadd.xlane.f32.xlu0 %v1856
  %v1984 = vpop.xlane.xlu0 %1983
  %1985 = vadd.xlane.f32.xlu0 %v1858
  %v1986 = vpop.xlane.xlu0 %1985
  %1987 = vadd.xlane.f32.xlu0 %v1860
  %v1988 = vpop.xlane.xlu0 %1987
  %1989 = vadd.xlane.f32.xlu0 %v1862
  %v1990 = vpop.xlane.xlu0 %1989
  %1991 = vadd.xlane.f32.xlu0 %v1864
  %v1992 = vpop.xlane.xlu0 %1991
  %1993 = vadd.xlane.f32.xlu0 %v1866
  %v1994 = vpop.xlane.xlu0 %1993
  %1995 = vadd.xlane.f32.xlu0 %v1868
  %v1996 = vpop.xlane.xlu0 %1995
  %1997 = vadd.xlane.f32.xlu0 %v1870
  %v1998 = vpop.xlane.xlu0 %1997
  %1999 = vadd.xlane.f32.xlu0 %v1872
  %v2000 = vpop.xlane.xlu0 %1999
  %2001 = vadd.xlane.f32.xlu0 %v1874
  %v2002 = vpop.xlane.xlu0 %2001
  %2003 = vadd.xlane.f32.xlu0 %v1876
  %v2004 = vpop.xlane.xlu0 %2003
  %2005 = vadd.xlane.f32.xlu0 %v1878
  %v2006 = vpop.xlane.xlu0 %2005
  %v2007 = vrcp.pop %v1880
  %v2008 = vrcp.pop %v1882
  %v2009 = vrcp.pop %v1884
  %v2010 = vrcp.pop %v1886
  %v2011 = vrcp.pop %v1888
  %v2012 = vrcp.pop %v1890
  %v2013 = vrcp.pop %v1892
  %v2014 = vrcp.pop %v1894
  %v2015 = vrcp.pop %v1896
  %v2016 = vrcp.pop %v1898
  %v2017 = vrcp.pop %v1900
  %v2018 = vrcp.pop %v1902
  %v2019 = vrcp.pop %v1904
  %v2020 = vrcp.pop %v1906
  %v2021 = vrcp.pop %v1908
  %v2022 = vrcp.pop %v1910
  %v2023 = vrcp.pop %v1912
  %v2024 = vrcp.pop %v1914
  %v2025 = vrcp.pop %v1916
  %v2026 = vrcp.pop %v1918
  %v2027 = vrcp.pop %v1920
  %v2028 = vrcp.pop %v1922
  %v2029 = vrcp.pop %v1924
  %v2030 = vrcp.pop %v1926
  %v2031 = vrcp.pop %v1928
  %v2032 = vrcp.pop %v1930
  %v2033 = vrcp.pop %v1932
  %v2034 = vrcp.pop %v1934
  %v2035 = vrcp.pop %v1936
  %v2036 = vrcp.pop %v1938
  %v2037 = vrcp.pop %v1940
  %v2038 = vrcp.pop %v1942
  %v2039 = vrcp.pop %v1944
  %v2040 = vrcp.pop %v1946
  %v2041 = vrcp.pop %v1948
  %v2042 = vrcp.pop %v1950
  %v2043 = vrcp.pop %v1952
  %v2044 = vrcp.pop %v1954
  %v2045 = vrcp.pop %v1956
  %v2046 = vrcp.pop %v1958
  %v2047 = vrcp.pop %v1960
  %v2048 = vrcp.pop %v1962
  %v2049 = vrcp.pop %v1964
  %v2050 = vrcp.pop %v1966
  %v2051 = vrcp.pop %v1968
  %v2052 = vrcp.pop %v1970
  %v2053 = vrcp.pop %v1972
  %v2054 = vrcp.pop %v1974
  %v2055 = vrcp.pop %v1976
  %v2056 = vrcp.pop %v1978
  %v2057 = vrcp.pop %v1980
  %v2058 = vrcp.pop %v1982
  %v2059 = vrcp.pop %v1984
  %v2060 = vrcp.pop %v1986
  %v2061 = vrcp.pop %v1988
  %v2062 = vrcp.pop %v1990
  %v2063 = vrcp.pop %v1992
  %v2064 = vrcp.pop %v1994
  %v2065 = vrcp.pop %v1996
  %v2066 = vrcp.pop %v1998
  %v2067 = vrcp.pop %v2000
  %v2068 = vrcp.pop %v2002
  %v2069 = vrcp.pop %v2004
  %v2070 = vrcp.pop %v2006
  %v2071 = vmul.f32 %v1752, %v2007
  %v2072 = vmul.f32 %v1754, %v2008
  %v2073 = vmul.f32 %v1756, %v2009
  %v2074 = vmul.f32 %v1758, %v2010
  %v2075 = vmul.f32 %v1760, %v2011
  %v2076 = vmul.f32 %v1762, %v2012
  %v2077 = vmul.f32 %v1764, %v2013
  %v2078 = vmul.f32 %v1766, %v2014
  %v2079 = vmul.f32 %v1768, %v2015
  %v2080 = vmul.f32 %v1770, %v2016
  %v2081 = vmul.f32 %v1772, %v2017
  %v2082 = vmul.f32 %v1774, %v2018
  %v2083 = vmul.f32 %v1776, %v2019
  %v2084 = vmul.f32 %v1778, %v2020
  %v2085 = vmul.f32 %v1780, %v2021
  %v2086 = vmul.f32 %v1782, %v2022
  %v2087 = vmul.f32 %v1784, %v2023
  %v2088 = vmul.f32 %v1786, %v2024
  %v2089 = vmul.f32 %v1788, %v2025
  %v2090 = vmul.f32 %v1790, %v2026
  %v2091 = vmul.f32 %v1792, %v2027
  %v2092 = vmul.f32 %v1794, %v2028
  %v2093 = vmul.f32 %v1796, %v2029
  %v2094 = vmul.f32 %v1798, %v2030
  %v2095 = vmul.f32 %v1800, %v2031
  %v2096 = vmul.f32 %v1802, %v2032
  %v2097 = vmul.f32 %v1804, %v2033
  %v2098 = vmul.f32 %v1806, %v2034
  %v2099 = vmul.f32 %v1808, %v2035
  %v2100 = vmul.f32 %v1810, %v2036
  %v2101 = vmul.f32 %v1812, %v2037
  %v2102 = vmul.f32 %v1814, %v2038
  %v2103 = vmul.f32 %v1816, %v2039
  %v2104 = vmul.f32 %v1818, %v2040
  %v2105 = vmul.f32 %v1820, %v2041
  %v2106 = vmul.f32 %v1822, %v2042
  %v2107 = vmul.f32 %v1824, %v2043
  %v2108 = vmul.f32 %v1826, %v2044
  %v2109 = vmul.f32 %v1828, %v2045
  %v2110 = vmul.f32 %v1830, %v2046
  %v2111 = vmul.f32 %v1832, %v2047
  %v2112 = vmul.f32 %v1834, %v2048
  %v2113 = vmul.f32 %v1836, %v2049
  %v2114 = vmul.f32 %v1838, %v2050
  %v2115 = vmul.f32 %v1840, %v2051
  %v2116 = vmul.f32 %v1842, %v2052
  %v2117 = vmul.f32 %v1844, %v2053
  %v2118 = vmul.f32 %v1846, %v2054
  %v2119 = vmul.f32 %v1848, %v2055
  %v2120 = vmul.f32 %v1850, %v2056
  %v2121 = vmul.f32 %v1852, %v2057
  %v2122 = vmul.f32 %v1854, %v2058
  %v2123 = vmul.f32 %v1856, %v2059
  %v2124 = vmul.f32 %v1858, %v2060
  %v2125 = vmul.f32 %v1860, %v2061
  %v2126 = vmul.f32 %v1862, %v2062
  %v2127 = vmul.f32 %v1864, %v2063
  %v2128 = vmul.f32 %v1866, %v2064
  %v2129 = vmul.f32 %v1868, %v2065
  %v2130 = vmul.f32 %v1870, %v2066
  %v2131 = vmul.f32 %v1872, %v2067
  %v2132 = vmul.f32 %v1874, %v2068
  %v2133 = vmul.f32 %v1876, %v2069
  %v2134 = vmul.f32 %v1878, %v2070
  %2135 = vmatpush.msra.mxu0 %v713
  %2136 = vmatpush.msra.mxu0 %v711
  %2137 = vmatpush.msra.mxu0 %v708
  %2138 = vmatpush.msra.mxu0 %v706
  %2139 = vmatpush.msra.mxu0 %v703
  %2140 = vmatpush.msra.mxu0 %v701
  %2141 = vmatpush.msra.mxu0 %v698
  %2142 = vmatpush.msra.mxu0 %v696
  %2143 = vmatpush.msra.mxu0 %v693
  %2144 = vmatpush.msra.mxu0 %v691
  %2145 = vmatpush.msra.mxu0 %v688
  %2146 = vmatpush.msra.mxu0 %v686
  %2147 = vmatpush.msra.mxu0 %v683
  %2148 = vmatpush.msra.mxu0 %v681
  %2149 = vmatpush.msra.mxu0 %v678
  %2150 = vmatpush.msra.mxu0 %v676
  %2151 = vmatmul.f32.gmra.mxu0 %v2071
  %v2152 = vpop.f32.mrf.mxu0
  %v2153 = vadd.f32 0.0, %v2152
  %2154 = vmatmul.f32.gmra.mxu0 %v2072
  %v2155 = vpop.f32.mrf.mxu0
  %v2156 = vadd.f32 0.0, %v2155
  %2157 = vmatmul.f32.gmra.mxu0 %v2073
  %v2158 = vpop.f32.mrf.mxu0
  %v2159 = vadd.f32 0.0, %v2158
  %2160 = vmatmul.f32.gmra.mxu0 %v2074
  %v2161 = vpop.f32.mrf.mxu0
  %v2162 = vadd.f32 0.0, %v2161
  %2163 = vmatmul.f32.gmra.mxu0 %v2075
  %v2164 = vpop.f32.mrf.mxu0
  %v2165 = vadd.f32 0.0, %v2164
  %2166 = vmatmul.f32.gmra.mxu0 %v2076
  %v2167 = vpop.f32.mrf.mxu0
  %v2168 = vadd.f32 0.0, %v2167
  %2169 = vmatmul.f32.gmra.mxu0 %v2077
  %v2170 = vpop.f32.mrf.mxu0
  %v2171 = vadd.f32 0.0, %v2170
  %2172 = vmatmul.f32.gmra.mxu0 %v2078
  %v2173 = vpop.f32.mrf.mxu0
  %v2174 = vadd.f32 0.0, %v2173
  %2175 = vmatmul.f32.gmra.mxu0 %v2079
  %v2176 = vpop.f32.mrf.mxu0
  %v2177 = vadd.f32 0.0, %v2176
  %2178 = vmatmul.f32.gmra.mxu0 %v2080
  %v2179 = vpop.f32.mrf.mxu0
  %v2180 = vadd.f32 0.0, %v2179
  %2181 = vmatmul.f32.gmra.mxu0 %v2081
  %v2182 = vpop.f32.mrf.mxu0
  %v2183 = vadd.f32 0.0, %v2182
  %2184 = vmatmul.f32.gmra.mxu0 %v2082
  %v2185 = vpop.f32.mrf.mxu0
  %v2186 = vadd.f32 0.0, %v2185
  %2187 = vmatmul.f32.gmra.mxu0 %v2083
  %v2188 = vpop.f32.mrf.mxu0
  %v2189 = vadd.f32 0.0, %v2188
  %2190 = vmatmul.f32.gmra.mxu0 %v2084
  %v2191 = vpop.f32.mrf.mxu0
  %v2192 = vadd.f32 0.0, %v2191
  %2193 = vmatmul.f32.gmra.mxu0 %v2085
  %v2194 = vpop.f32.mrf.mxu0
  %v2195 = vadd.f32 0.0, %v2194
  %2196 = vmatmul.f32.gmra.mxu0 %v2086
  %v2197 = vpop.f32.mrf.mxu0
  %v2198 = vadd.f32 0.0, %v2197
  %2199 = vdwg.mxu0
  %2200 = vmatpush.msra.mxu0 %v774
  %2201 = vmatpush.msra.mxu0 %v772
  %2202 = vmatpush.msra.mxu0 %v769
  %2203 = vmatpush.msra.mxu0 %v767
  %2204 = vmatpush.msra.mxu0 %v764
  %2205 = vmatpush.msra.mxu0 %v762
  %2206 = vmatpush.msra.mxu0 %v759
  %2207 = vmatpush.msra.mxu0 %v757
  %2208 = vmatpush.msra.mxu0 %v754
  %2209 = vmatpush.msra.mxu0 %v752
  %2210 = vmatpush.msra.mxu0 %v749
  %2211 = vmatpush.msra.mxu0 %v747
  %2212 = vmatpush.msra.mxu0 %v744
  %2213 = vmatpush.msra.mxu0 %v742
  %2214 = vmatpush.msra.mxu0 %v739
  %2215 = vmatpush.msra.mxu0 %v737
  %2216 = vmatmul.f32.gmra.mxu0 %v2087
  %v2217 = vpop.f32.mrf.mxu0
  %v2218 = vadd.f32 0.0, %v2217
  %2219 = vmatmul.f32.gmra.mxu0 %v2088
  %v2220 = vpop.f32.mrf.mxu0
  %v2221 = vadd.f32 0.0, %v2220
  %2222 = vmatmul.f32.gmra.mxu0 %v2089
  %v2223 = vpop.f32.mrf.mxu0
  %v2224 = vadd.f32 0.0, %v2223
  %2225 = vmatmul.f32.gmra.mxu0 %v2090
  %v2226 = vpop.f32.mrf.mxu0
  %v2227 = vadd.f32 0.0, %v2226
  %2228 = vmatmul.f32.gmra.mxu0 %v2091
  %v2229 = vpop.f32.mrf.mxu0
  %v2230 = vadd.f32 0.0, %v2229
  %2231 = vmatmul.f32.gmra.mxu0 %v2092
  %v2232 = vpop.f32.mrf.mxu0
  %v2233 = vadd.f32 0.0, %v2232
  %2234 = vmatmul.f32.gmra.mxu0 %v2093
  %v2235 = vpop.f32.mrf.mxu0
  %v2236 = vadd.f32 0.0, %v2235
  %2237 = vmatmul.f32.gmra.mxu0 %v2094
  %v2238 = vpop.f32.mrf.mxu0
  %v2239 = vadd.f32 0.0, %v2238
  %2240 = vmatmul.f32.gmra.mxu0 %v2095
  %v2241 = vpop.f32.mrf.mxu0
  %v2242 = vadd.f32 0.0, %v2241
  %2243 = vmatmul.f32.gmra.mxu0 %v2096
  %v2244 = vpop.f32.mrf.mxu0
  %v2245 = vadd.f32 0.0, %v2244
  %2246 = vmatmul.f32.gmra.mxu0 %v2097
  %v2247 = vpop.f32.mrf.mxu0
  %v2248 = vadd.f32 0.0, %v2247
  %2249 = vmatmul.f32.gmra.mxu0 %v2098
  %v2250 = vpop.f32.mrf.mxu0
  %v2251 = vadd.f32 0.0, %v2250
  %2252 = vmatmul.f32.gmra.mxu0 %v2099
  %v2253 = vpop.f32.mrf.mxu0
  %v2254 = vadd.f32 0.0, %v2253
  %2255 = vmatmul.f32.gmra.mxu0 %v2100
  %v2256 = vpop.f32.mrf.mxu0
  %v2257 = vadd.f32 0.0, %v2256
  %2258 = vmatmul.f32.gmra.mxu0 %v2101
  %v2259 = vpop.f32.mrf.mxu0
  %v2260 = vadd.f32 0.0, %v2259
  %2261 = vmatmul.f32.gmra.mxu0 %v2102
  %v2262 = vpop.f32.mrf.mxu0
  %v2263 = vadd.f32 0.0, %v2262
  %2264 = vdwg.mxu0
  %2265 = vmatpush.msra.mxu0 %v835
  %2266 = vmatpush.msra.mxu0 %v833
  %2267 = vmatpush.msra.mxu0 %v830
  %2268 = vmatpush.msra.mxu0 %v828
  %2269 = vmatpush.msra.mxu0 %v825
  %2270 = vmatpush.msra.mxu0 %v823
  %2271 = vmatpush.msra.mxu0 %v820
  %2272 = vmatpush.msra.mxu0 %v818
  %2273 = vmatpush.msra.mxu0 %v815
  %2274 = vmatpush.msra.mxu0 %v813
  %2275 = vmatpush.msra.mxu0 %v810
  %2276 = vmatpush.msra.mxu0 %v808
  %2277 = vmatpush.msra.mxu0 %v805
  %2278 = vmatpush.msra.mxu0 %v803
  %2279 = vmatpush.msra.mxu0 %v800
  %2280 = vmatpush.msra.mxu0 %v798
  %2281 = vmatmul.f32.gmra.mxu0 %v2103
  %v2282 = vpop.f32.mrf.mxu0
  %v2283 = vadd.f32 0.0, %v2282
  %2284 = vmatmul.f32.gmra.mxu0 %v2104
  %v2285 = vpop.f32.mrf.mxu0
  %v2286 = vadd.f32 0.0, %v2285
  %2287 = vmatmul.f32.gmra.mxu0 %v2105
  %v2288 = vpop.f32.mrf.mxu0
  %v2289 = vadd.f32 0.0, %v2288
  %2290 = vmatmul.f32.gmra.mxu0 %v2106
  %v2291 = vpop.f32.mrf.mxu0
  %v2292 = vadd.f32 0.0, %v2291
  %2293 = vmatmul.f32.gmra.mxu0 %v2107
  %v2294 = vpop.f32.mrf.mxu0
  %v2295 = vadd.f32 0.0, %v2294
  %2296 = vmatmul.f32.gmra.mxu0 %v2108
  %v2297 = vpop.f32.mrf.mxu0
  %v2298 = vadd.f32 0.0, %v2297
  %2299 = vmatmul.f32.gmra.mxu0 %v2109
  %v2300 = vpop.f32.mrf.mxu0
  %v2301 = vadd.f32 0.0, %v2300
  %2302 = vmatmul.f32.gmra.mxu0 %v2110
  %v2303 = vpop.f32.mrf.mxu0
  %v2304 = vadd.f32 0.0, %v2303
  %2305 = vmatmul.f32.gmra.mxu0 %v2111
  %v2306 = vpop.f32.mrf.mxu0
  %v2307 = vadd.f32 0.0, %v2306
  %2308 = vmatmul.f32.gmra.mxu0 %v2112
  %v2309 = vpop.f32.mrf.mxu0
  %v2310 = vadd.f32 0.0, %v2309
  %2311 = vmatmul.f32.gmra.mxu0 %v2113
  %v2312 = vpop.f32.mrf.mxu0
  %v2313 = vadd.f32 0.0, %v2312
  %2314 = vmatmul.f32.gmra.mxu0 %v2114
  %v2315 = vpop.f32.mrf.mxu0
  %v2316 = vadd.f32 0.0, %v2315
  %2317 = vmatmul.f32.gmra.mxu0 %v2115
  %v2318 = vpop.f32.mrf.mxu0
  %v2319 = vadd.f32 0.0, %v2318
  %2320 = vmatmul.f32.gmra.mxu0 %v2116
  %v2321 = vpop.f32.mrf.mxu0
  %v2322 = vadd.f32 0.0, %v2321
  %2323 = vmatmul.f32.gmra.mxu0 %v2117
  %v2324 = vpop.f32.mrf.mxu0
  %v2325 = vadd.f32 0.0, %v2324
  %2326 = vmatmul.f32.gmra.mxu0 %v2118
  %v2327 = vpop.f32.mrf.mxu0
  %v2328 = vadd.f32 0.0, %v2327
  %2329 = vdwg.mxu0
  %2330 = vmatpush.msra.mxu0 %v896
  %2331 = vmatpush.msra.mxu0 %v894
  %2332 = vmatpush.msra.mxu0 %v891
  %2333 = vmatpush.msra.mxu0 %v889
  %2334 = vmatpush.msra.mxu0 %v886
  %2335 = vmatpush.msra.mxu0 %v884
  %2336 = vmatpush.msra.mxu0 %v881
  %2337 = vmatpush.msra.mxu0 %v879
  %2338 = vmatpush.msra.mxu0 %v876
  %2339 = vmatpush.msra.mxu0 %v874
  %2340 = vmatpush.msra.mxu0 %v871
  %2341 = vmatpush.msra.mxu0 %v869
  %2342 = vmatpush.msra.mxu0 %v866
  %2343 = vmatpush.msra.mxu0 %v864
  %2344 = vmatpush.msra.mxu0 %v861
  %2345 = vmatpush.msra.mxu0 %v859
  %2346 = vmatmul.f32.gmra.mxu0 %v2119
  %v2347 = vpop.f32.mrf.mxu0
  %v2348 = vadd.f32 0.0, %v2347
  %2349 = vmatmul.f32.gmra.mxu0 %v2120
  %v2350 = vpop.f32.mrf.mxu0
  %v2351 = vadd.f32 0.0, %v2350
  %2352 = vmatmul.f32.gmra.mxu0 %v2121
  %v2353 = vpop.f32.mrf.mxu0
  %v2354 = vadd.f32 0.0, %v2353
  %2355 = vmatmul.f32.gmra.mxu0 %v2122
  %v2356 = vpop.f32.mrf.mxu0
  %v2357 = vadd.f32 0.0, %v2356
  %2358 = vmatmul.f32.gmra.mxu0 %v2123
  %v2359 = vpop.f32.mrf.mxu0
  %v2360 = vadd.f32 0.0, %v2359
  %2361 = vmatmul.f32.gmra.mxu0 %v2124
  %v2362 = vpop.f32.mrf.mxu0
  %v2363 = vadd.f32 0.0, %v2362
  %2364 = vmatmul.f32.gmra.mxu0 %v2125
  %v2365 = vpop.f32.mrf.mxu0
  %v2366 = vadd.f32 0.0, %v2365
  %2367 = vmatmul.f32.gmra.mxu0 %v2126
  %v2368 = vpop.f32.mrf.mxu0
  %v2369 = vadd.f32 0.0, %v2368
  %2370 = vmatmul.f32.gmra.mxu0 %v2127
  %v2371 = vpop.f32.mrf.mxu0
  %v2372 = vadd.f32 0.0, %v2371
  %2373 = vmatmul.f32.gmra.mxu0 %v2128
  %v2374 = vpop.f32.mrf.mxu0
  %v2375 = vadd.f32 0.0, %v2374
  %2376 = vmatmul.f32.gmra.mxu0 %v2129
  %v2377 = vpop.f32.mrf.mxu0
  %v2378 = vadd.f32 0.0, %v2377
  %2379 = vmatmul.f32.gmra.mxu0 %v2130
  %v2380 = vpop.f32.mrf.mxu0
  %v2381 = vadd.f32 0.0, %v2380
  %2382 = vmatmul.f32.gmra.mxu0 %v2131
  %v2383 = vpop.f32.mrf.mxu0
  %v2384 = vadd.f32 0.0, %v2383
  %2385 = vmatmul.f32.gmra.mxu0 %v2132
  %v2386 = vpop.f32.mrf.mxu0
  %v2387 = vadd.f32 0.0, %v2386
  %2388 = vmatmul.f32.gmra.mxu0 %v2133
  %v2389 = vpop.f32.mrf.mxu0
  %v2390 = vadd.f32 0.0, %v2389
  %2391 = vmatmul.f32.gmra.mxu0 %v2134
  %v2392 = vpop.f32.mrf.mxu0
  %v2393 = vadd.f32 0.0, %v2392
  %2394 = vdwg.mxu0
  %v2395 = vpack.c.bf16 %v2153, %v2153
  %v2396 = vpack.c.bf16 %v2156, %v2156
  %v2397 = vpack.c.bf16 %v2159, %v2159
  %v2398 = vpack.c.bf16 %v2162, %v2162
  %v2399 = vpack.c.bf16 %v2165, %v2165
  %v2400 = vpack.c.bf16 %v2168, %v2168
  %v2401 = vpack.c.bf16 %v2171, %v2171
  %v2402 = vpack.c.bf16 %v2174, %v2174
  %v2403 = vpack.c.bf16 %v2177, %v2177
  %v2404 = vpack.c.bf16 %v2180, %v2180
  %v2405 = vpack.c.bf16 %v2183, %v2183
  %v2406 = vpack.c.bf16 %v2186, %v2186
  %v2407 = vpack.c.bf16 %v2189, %v2189
  %v2408 = vpack.c.bf16 %v2192, %v2192
  %v2409 = vpack.c.bf16 %v2195, %v2195
  %v2410 = vpack.c.bf16 %v2198, %v2198
  %v2411 = vpack.c.bf16 %v2218, %v2218
  %v2412 = vpack.c.bf16 %v2221, %v2221
  %v2413 = vpack.c.bf16 %v2224, %v2224
  %v2414 = vpack.c.bf16 %v2227, %v2227
  %v2415 = vpack.c.bf16 %v2230, %v2230
  %v2416 = vpack.c.bf16 %v2233, %v2233
  %v2417 = vpack.c.bf16 %v2236, %v2236
  %v2418 = vpack.c.bf16 %v2239, %v2239
  %v2419 = vpack.c.bf16 %v2242, %v2242
  %v2420 = vpack.c.bf16 %v2245, %v2245
  %v2421 = vpack.c.bf16 %v2248, %v2248
  %v2422 = vpack.c.bf16 %v2251, %v2251
  %v2423 = vpack.c.bf16 %v2254, %v2254
  %v2424 = vpack.c.bf16 %v2257, %v2257
  %v2425 = vpack.c.bf16 %v2260, %v2260
  %v2426 = vpack.c.bf16 %v2263, %v2263
  %v2427 = vpack.c.bf16 %v2283, %v2283
  %v2428 = vpack.c.bf16 %v2286, %v2286
  %v2429 = vpack.c.bf16 %v2289, %v2289
  %v2430 = vpack.c.bf16 %v2292, %v2292
  %v2431 = vpack.c.bf16 %v2295, %v2295
  %v2432 = vpack.c.bf16 %v2298, %v2298
  %v2433 = vpack.c.bf16 %v2301, %v2301
  %v2434 = vpack.c.bf16 %v2304, %v2304
  %v2435 = vpack.c.bf16 %v2307, %v2307
  %v2436 = vpack.c.bf16 %v2310, %v2310
  %v2437 = vpack.c.bf16 %v2313, %v2313
  %v2438 = vpack.c.bf16 %v2316, %v2316
  %v2439 = vpack.c.bf16 %v2319, %v2319
  %v2440 = vpack.c.bf16 %v2322, %v2322
  %v2441 = vpack.c.bf16 %v2325, %v2325
  %v2442 = vpack.c.bf16 %v2328, %v2328
  %v2443 = vpack.c.bf16 %v2348, %v2348
  %v2444 = vpack.c.bf16 %v2351, %v2351
  %v2445 = vpack.c.bf16 %v2354, %v2354
  %v2446 = vpack.c.bf16 %v2357, %v2357
  %v2447 = vpack.c.bf16 %v2360, %v2360
  %v2448 = vpack.c.bf16 %v2363, %v2363
  %v2449 = vpack.c.bf16 %v2366, %v2366
  %v2450 = vpack.c.bf16 %v2369, %v2369
  %v2451 = vpack.c.bf16 %v2372, %v2372
  %v2452 = vpack.c.bf16 %v2375, %v2375
  %v2453 = vpack.c.bf16 %v2378, %v2378
  %v2454 = vpack.c.bf16 %v2381, %v2381
  %v2455 = vpack.c.bf16 %v2384, %v2384
  %v2456 = vpack.c.bf16 %v2387, %v2387
  %v2457 = vpack.c.bf16 %v2390, %v2390
  %v2458 = vpack.c.bf16 %v2393, %v2393
  %v2459 = vld [vmem:[%s2] sm:$0xf]
  %v2460 = vld [vmem:[%s2 + $0x4] sm:$0xf]
  %v2461 = vld [vmem:[%s2 + $0x8] sm:$0xf]
  %v2462 = vld [vmem:[%s2 + $0xc] sm:$0xf]
  %v2479 = vunpack.c.l.b16 %v2395
  %v2480 = vunpack.c.l.b16 %v2396
  %v2481 = vunpack.c.l.b16 %v2397
  %v2482 = vunpack.c.l.b16 %v2398
  %v2483 = vunpack.c.l.b16 %v2399
  %v2484 = vunpack.c.l.b16 %v2400
  %v2485 = vunpack.c.l.b16 %v2401
  %v2486 = vunpack.c.l.b16 %v2402
  %v2487 = vunpack.c.l.b16 %v2403
  %v2488 = vunpack.c.l.b16 %v2404
  %v2489 = vunpack.c.l.b16 %v2405
  %v2490 = vunpack.c.l.b16 %v2406
  %v2491 = vunpack.c.l.b16 %v2407
  %v2492 = vunpack.c.l.b16 %v2408
  %v2493 = vunpack.c.l.b16 %v2409
  %v2494 = vunpack.c.l.b16 %v2410
  %v2495 = vpack.c.b16 %v2480, %v2479
  %v2496 = vpack.c.b16 %v2482, %v2481
  %v2497 = vpack.c.b16 %v2484, %v2483
  %v2498 = vpack.c.b16 %v2486, %v2485
  %v2499 = vpack.c.b16 %v2488, %v2487
  %v2500 = vpack.c.b16 %v2490, %v2489
  %v2501 = vpack.c.b16 %v2492, %v2491
  %v2502 = vpack.c.b16 %v2494, %v2493
  %v2504 = vsel %vm914, %v2495, 0
  %v2507 = vsel %vm914, %v2496, 0
  %v2510 = vsel %vm914, %v2497, 0
  %v2513 = vsel %vm914, %v2498, 0
  %v2516 = vsel %vm914, %v2499, 0
  %v2519 = vsel %vm914, %v2500, 0
  %v2522 = vsel %vm914, %v2501, 0
  %v2525 = vsel %vm914, %v2502, 0
  %vm2527 = vcmask 1043456
  %v2529 = vsel %vm2527, %v2459, 0
  %2531 = vmatpush.bf16.msra.mxu0 0
  %2532 = vmatpush.bf16.msra.mxu0 0
  %2533 = vmatpush.bf16.msra.mxu0 0
  %2534 = vmatpush.bf16.msra.mxu0 0
  %2535 = vmatpush.bf16.msra.mxu0 0
  %2536 = vmatpush.bf16.msra.mxu0 0
  %2537 = vmatpush.bf16.msra.mxu0 0
  %2538 = vmatpush.bf16.msra.mxu0 %v2529
  %2539 = vmatmul.bf16.gmra.mxu0 %v2504
  %v2540 = vpop.f32.mrf.mxu0
  %v2541 = vadd.f32 0.0, %v2540
  %v2542 = vpop.f32.mrf.mxu0
  %v2543 = vadd.f32 0.0, %v2542
  %2544 = vmatmul.bf16.gmra.mxu0 %v2507
  %v2545 = vpop.f32.mrf.mxu0
  %v2546 = vadd.f32 0.0, %v2545
  %v2547 = vpop.f32.mrf.mxu0
  %v2548 = vadd.f32 0.0, %v2547
  %2549 = vmatmul.bf16.gmra.mxu0 %v2510
  %v2550 = vpop.f32.mrf.mxu0
  %v2551 = vadd.f32 0.0, %v2550
  %v2552 = vpop.f32.mrf.mxu0
  %v2553 = vadd.f32 0.0, %v2552
  %2554 = vmatmul.bf16.gmra.mxu0 %v2513
  %v2555 = vpop.f32.mrf.mxu0
  %v2556 = vadd.f32 0.0, %v2555
  %v2557 = vpop.f32.mrf.mxu0
  %v2558 = vadd.f32 0.0, %v2557
  %2559 = vmatmul.bf16.gmra.mxu0 %v2516
  %v2560 = vpop.f32.mrf.mxu0
  %v2561 = vadd.f32 0.0, %v2560
  %v2562 = vpop.f32.mrf.mxu0
  %v2563 = vadd.f32 0.0, %v2562
  %2564 = vmatmul.bf16.gmra.mxu0 %v2519
  %v2565 = vpop.f32.mrf.mxu0
  %v2566 = vadd.f32 0.0, %v2565
  %v2567 = vpop.f32.mrf.mxu0
  %v2568 = vadd.f32 0.0, %v2567
  %2569 = vmatmul.bf16.gmra.mxu0 %v2522
  %v2570 = vpop.f32.mrf.mxu0
  %v2571 = vadd.f32 0.0, %v2570
  %v2572 = vpop.f32.mrf.mxu0
  %v2573 = vadd.f32 0.0, %v2572
  %2574 = vmatmul.bf16.gmra.mxu0 %v2525
  %v2575 = vpop.f32.mrf.mxu0
  %v2576 = vadd.f32 0.0, %v2575
  %v2577 = vpop.f32.mrf.mxu0
  %v2578 = vadd.f32 0.0, %v2577
  %2579 = vdwg.mxu0
  %v2596 = vunpack.c.l.b16 %v2411
  %v2597 = vunpack.c.l.b16 %v2412
  %v2598 = vunpack.c.l.b16 %v2413
  %v2599 = vunpack.c.l.b16 %v2414
  %v2600 = vunpack.c.l.b16 %v2415
  %v2601 = vunpack.c.l.b16 %v2416
  %v2602 = vunpack.c.l.b16 %v2417
  %v2603 = vunpack.c.l.b16 %v2418
  %v2604 = vunpack.c.l.b16 %v2419
  %v2605 = vunpack.c.l.b16 %v2420
  %v2606 = vunpack.c.l.b16 %v2421
  %v2607 = vunpack.c.l.b16 %v2422
  %v2608 = vunpack.c.l.b16 %v2423
  %v2609 = vunpack.c.l.b16 %v2424
  %v2610 = vunpack.c.l.b16 %v2425
  %v2611 = vunpack.c.l.b16 %v2426
  %v2612 = vpack.c.b16 %v2597, %v2596
  %v2613 = vpack.c.b16 %v2599, %v2598
  %v2614 = vpack.c.b16 %v2601, %v2600
  %v2615 = vpack.c.b16 %v2603, %v2602
  %v2616 = vpack.c.b16 %v2605, %v2604
  %v2617 = vpack.c.b16 %v2607, %v2606
  %v2618 = vpack.c.b16 %v2609, %v2608
  %v2619 = vpack.c.b16 %v2611, %v2610
  %v2621 = vsel %vm914, %v2612, 0
  %v2624 = vsel %vm914, %v2613, 0
  %v2627 = vsel %vm914, %v2614, 0
  %v2630 = vsel %vm914, %v2615, 0
  %v2633 = vsel %vm914, %v2616, 0
  %v2636 = vsel %vm914, %v2617, 0
  %v2639 = vsel %vm914, %v2618, 0
  %v2642 = vsel %vm914, %v2619, 0
  %v2645 = vsel %vm2527, %v2460, 0
  %2647 = vmatpush.bf16.msra.mxu0 0
  %2648 = vmatpush.bf16.msra.mxu0 0
  %2649 = vmatpush.bf16.msra.mxu0 0
  %2650 = vmatpush.bf16.msra.mxu0 0
  %2651 = vmatpush.bf16.msra.mxu0 0
  %2652 = vmatpush.bf16.msra.mxu0 0
  %2653 = vmatpush.bf16.msra.mxu0 0
  %2654 = vmatpush.bf16.msra.mxu0 %v2645
  %2655 = vmatmul.bf16.gmra.mxu0 %v2621
  %v2656 = vpop.f32.mrf.mxu0
  %v2657 = vadd.f32 0.0, %v2656
  %v2658 = vpop.f32.mrf.mxu0
  %v2659 = vadd.f32 0.0, %v2658
  %2660 = vmatmul.bf16.gmra.mxu0 %v2624
  %v2661 = vpop.f32.mrf.mxu0
  %v2662 = vadd.f32 0.0, %v2661
  %v2663 = vpop.f32.mrf.mxu0
  %v2664 = vadd.f32 0.0, %v2663
  %2665 = vmatmul.bf16.gmra.mxu0 %v2627
  %v2666 = vpop.f32.mrf.mxu0
  %v2667 = vadd.f32 0.0, %v2666
  %v2668 = vpop.f32.mrf.mxu0
  %v2669 = vadd.f32 0.0, %v2668
  %2670 = vmatmul.bf16.gmra.mxu0 %v2630
  %v2671 = vpop.f32.mrf.mxu0
  %v2672 = vadd.f32 0.0, %v2671
  %v2673 = vpop.f32.mrf.mxu0
  %v2674 = vadd.f32 0.0, %v2673
  %2675 = vmatmul.bf16.gmra.mxu0 %v2633
  %v2676 = vpop.f32.mrf.mxu0
  %v2677 = vadd.f32 0.0, %v2676
  %v2678 = vpop.f32.mrf.mxu0
  %v2679 = vadd.f32 0.0, %v2678
  %2680 = vmatmul.bf16.gmra.mxu0 %v2636
  %v2681 = vpop.f32.mrf.mxu0
  %v2682 = vadd.f32 0.0, %v2681
  %v2683 = vpop.f32.mrf.mxu0
  %v2684 = vadd.f32 0.0, %v2683
  %2685 = vmatmul.bf16.gmra.mxu0 %v2639
  %v2686 = vpop.f32.mrf.mxu0
  %v2687 = vadd.f32 0.0, %v2686
  %v2688 = vpop.f32.mrf.mxu0
  %v2689 = vadd.f32 0.0, %v2688
  %2690 = vmatmul.bf16.gmra.mxu0 %v2642
  %v2691 = vpop.f32.mrf.mxu0
  %v2692 = vadd.f32 0.0, %v2691
  %v2693 = vpop.f32.mrf.mxu0
  %v2694 = vadd.f32 0.0, %v2693
  %2695 = vdwg.mxu0
  %v2712 = vunpack.c.l.b16 %v2427
  %v2713 = vunpack.c.l.b16 %v2428
  %v2714 = vunpack.c.l.b16 %v2429
  %v2715 = vunpack.c.l.b16 %v2430
  %v2716 = vunpack.c.l.b16 %v2431
  %v2717 = vunpack.c.l.b16 %v2432
  %v2718 = vunpack.c.l.b16 %v2433
  %v2719 = vunpack.c.l.b16 %v2434
  %v2720 = vunpack.c.l.b16 %v2435
  %v2721 = vunpack.c.l.b16 %v2436
  %v2722 = vunpack.c.l.b16 %v2437
  %v2723 = vunpack.c.l.b16 %v2438
  %v2724 = vunpack.c.l.b16 %v2439
  %v2725 = vunpack.c.l.b16 %v2440
  %v2726 = vunpack.c.l.b16 %v2441
  %v2727 = vunpack.c.l.b16 %v2442
  %v2728 = vpack.c.b16 %v2713, %v2712
  %v2729 = vpack.c.b16 %v2715, %v2714
  %v2730 = vpack.c.b16 %v2717, %v2716
  %v2731 = vpack.c.b16 %v2719, %v2718
  %v2732 = vpack.c.b16 %v2721, %v2720
  %v2733 = vpack.c.b16 %v2723, %v2722
  %v2734 = vpack.c.b16 %v2725, %v2724
  %v2735 = vpack.c.b16 %v2727, %v2726
  %v2737 = vsel %vm914, %v2728, 0
  %v2740 = vsel %vm914, %v2729, 0
  %v2743 = vsel %vm914, %v2730, 0
  %v2746 = vsel %vm914, %v2731, 0
  %v2749 = vsel %vm914, %v2732, 0
  %v2752 = vsel %vm914, %v2733, 0
  %v2755 = vsel %vm914, %v2734, 0
  %v2758 = vsel %vm914, %v2735, 0
  %v2761 = vsel %vm2527, %v2461, 0
  %2763 = vmatpush.bf16.msra.mxu0 0
  %2764 = vmatpush.bf16.msra.mxu0 0
  %2765 = vmatpush.bf16.msra.mxu0 0
  %2766 = vmatpush.bf16.msra.mxu0 0
  %2767 = vmatpush.bf16.msra.mxu0 0
  %2768 = vmatpush.bf16.msra.mxu0 0
  %2769 = vmatpush.bf16.msra.mxu0 0
  %2770 = vmatpush.bf16.msra.mxu0 %v2761
  %2771 = vmatmul.bf16.gmra.mxu0 %v2737
  %v2772 = vpop.f32.mrf.mxu0
  %v2773 = vadd.f32 0.0, %v2772
  %v2774 = vpop.f32.mrf.mxu0
  %v2775 = vadd.f32 0.0, %v2774
  %2776 = vmatmul.bf16.gmra.mxu0 %v2740
  %v2777 = vpop.f32.mrf.mxu0
  %v2778 = vadd.f32 0.0, %v2777
  %v2779 = vpop.f32.mrf.mxu0
  %v2780 = vadd.f32 0.0, %v2779
  %2781 = vmatmul.bf16.gmra.mxu0 %v2743
  %v2782 = vpop.f32.mrf.mxu0
  %v2783 = vadd.f32 0.0, %v2782
  %v2784 = vpop.f32.mrf.mxu0
  %v2785 = vadd.f32 0.0, %v2784
  %2786 = vmatmul.bf16.gmra.mxu0 %v2746
  %v2787 = vpop.f32.mrf.mxu0
  %v2788 = vadd.f32 0.0, %v2787
  %v2789 = vpop.f32.mrf.mxu0
  %v2790 = vadd.f32 0.0, %v2789
  %2791 = vmatmul.bf16.gmra.mxu0 %v2749
  %v2792 = vpop.f32.mrf.mxu0
  %v2793 = vadd.f32 0.0, %v2792
  %v2794 = vpop.f32.mrf.mxu0
  %v2795 = vadd.f32 0.0, %v2794
  %2796 = vmatmul.bf16.gmra.mxu0 %v2752
  %v2797 = vpop.f32.mrf.mxu0
  %v2798 = vadd.f32 0.0, %v2797
  %v2799 = vpop.f32.mrf.mxu0
  %v2800 = vadd.f32 0.0, %v2799
  %2801 = vmatmul.bf16.gmra.mxu0 %v2755
  %v2802 = vpop.f32.mrf.mxu0
  %v2803 = vadd.f32 0.0, %v2802
  %v2804 = vpop.f32.mrf.mxu0
  %v2805 = vadd.f32 0.0, %v2804
  %2806 = vmatmul.bf16.gmra.mxu0 %v2758
  %v2807 = vpop.f32.mrf.mxu0
  %v2808 = vadd.f32 0.0, %v2807
  %v2809 = vpop.f32.mrf.mxu0
  %v2810 = vadd.f32 0.0, %v2809
  %2811 = vdwg.mxu0
  %v2828 = vunpack.c.l.b16 %v2443
  %v2829 = vunpack.c.l.b16 %v2444
  %v2830 = vunpack.c.l.b16 %v2445
  %v2831 = vunpack.c.l.b16 %v2446
  %v2832 = vunpack.c.l.b16 %v2447
  %v2833 = vunpack.c.l.b16 %v2448
  %v2834 = vunpack.c.l.b16 %v2449
  %v2835 = vunpack.c.l.b16 %v2450
  %v2836 = vunpack.c.l.b16 %v2451
  %v2837 = vunpack.c.l.b16 %v2452
  %v2838 = vunpack.c.l.b16 %v2453
  %v2839 = vunpack.c.l.b16 %v2454
  %v2840 = vunpack.c.l.b16 %v2455
  %v2841 = vunpack.c.l.b16 %v2456
  %v2842 = vunpack.c.l.b16 %v2457
  %v2843 = vunpack.c.l.b16 %v2458
  %v2844 = vpack.c.b16 %v2829, %v2828
  %v2845 = vpack.c.b16 %v2831, %v2830
  %v2846 = vpack.c.b16 %v2833, %v2832
  %v2847 = vpack.c.b16 %v2835, %v2834
  %v2848 = vpack.c.b16 %v2837, %v2836
  %v2849 = vpack.c.b16 %v2839, %v2838
  %v2850 = vpack.c.b16 %v2841, %v2840
  %v2851 = vpack.c.b16 %v2843, %v2842
  %v2853 = vsel %vm914, %v2844, 0
  %v2856 = vsel %vm914, %v2845, 0
  %v2859 = vsel %vm914, %v2846, 0
  %v2862 = vsel %vm914, %v2847, 0
  %v2865 = vsel %vm914, %v2848, 0
  %v2868 = vsel %vm914, %v2849, 0
  %v2871 = vsel %vm914, %v2850, 0
  %v2874 = vsel %vm914, %v2851, 0
  %v2877 = vsel %vm2527, %v2462, 0
  %2879 = vmatpush.bf16.msra.mxu0 0
  %2880 = vmatpush.bf16.msra.mxu0 0
  %2881 = vmatpush.bf16.msra.mxu0 0
  %2882 = vmatpush.bf16.msra.mxu0 0
  %2883 = vmatpush.bf16.msra.mxu0 0
  %2884 = vmatpush.bf16.msra.mxu0 0
  %2885 = vmatpush.bf16.msra.mxu0 0
  %2886 = vmatpush.bf16.msra.mxu0 %v2877
  %2887 = vmatmul.bf16.gmra.mxu0 %v2853
  %v2888 = vpop.f32.mrf.mxu0
  %v2889 = vadd.f32 0.0, %v2888
  %v2890 = vpop.f32.mrf.mxu0
  %v2891 = vadd.f32 0.0, %v2890
  %2892 = vmatmul.bf16.gmra.mxu0 %v2856
  %v2893 = vpop.f32.mrf.mxu0
  %v2894 = vadd.f32 0.0, %v2893
  %v2895 = vpop.f32.mrf.mxu0
  %v2896 = vadd.f32 0.0, %v2895
  %2897 = vmatmul.bf16.gmra.mxu0 %v2859
  %v2898 = vpop.f32.mrf.mxu0
  %v2899 = vadd.f32 0.0, %v2898
  %v2900 = vpop.f32.mrf.mxu0
  %v2901 = vadd.f32 0.0, %v2900
  %2902 = vmatmul.bf16.gmra.mxu0 %v2862
  %v2903 = vpop.f32.mrf.mxu0
  %v2904 = vadd.f32 0.0, %v2903
  %v2905 = vpop.f32.mrf.mxu0
  %v2906 = vadd.f32 0.0, %v2905
  %2907 = vmatmul.bf16.gmra.mxu0 %v2865
  %v2908 = vpop.f32.mrf.mxu0
  %v2909 = vadd.f32 0.0, %v2908
  %v2910 = vpop.f32.mrf.mxu0
  %v2911 = vadd.f32 0.0, %v2910
  %2912 = vmatmul.bf16.gmra.mxu0 %v2868
  %v2913 = vpop.f32.mrf.mxu0
  %v2914 = vadd.f32 0.0, %v2913
  %v2915 = vpop.f32.mrf.mxu0
  %v2916 = vadd.f32 0.0, %v2915
  %2917 = vmatmul.bf16.gmra.mxu0 %v2871
  %v2918 = vpop.f32.mrf.mxu0
  %v2919 = vadd.f32 0.0, %v2918
  %v2920 = vpop.f32.mrf.mxu0
  %v2921 = vadd.f32 0.0, %v2920
  %2922 = vmatmul.bf16.gmra.mxu0 %v2874
  %v2923 = vpop.f32.mrf.mxu0
  %v2924 = vadd.f32 0.0, %v2923
  %v2925 = vpop.f32.mrf.mxu0
  %v2926 = vadd.f32 0.0, %v2925
  %2927 = vdwg.mxu0
  %v2928 = vsel %vm153, %v2541, 0.0
  %v2929 = vsel %vm153, %v2657, 0.0
  %v2930 = vadd.f32 %v2928, %v2929
  %v2931 = vsel %vm153, %v2773, 0.0
  %v2932 = vadd.f32 %v2930, %v2931
  %v2933 = vsel %vm153, %v2889, 0.0
  %v2934 = vadd.f32 %v2932, %v2933
  %v2935 = vsel %vm153, %v2543, 0.0
  %v2936 = vsel %vm153, %v2659, 0.0
  %v2937 = vadd.f32 %v2935, %v2936
  %v2938 = vsel %vm153, %v2775, 0.0
  %v2939 = vadd.f32 %v2937, %v2938
  %v2940 = vsel %vm153, %v2891, 0.0
  %v2941 = vadd.f32 %v2939, %v2940
  %v2942 = vsel %vm153, %v2546, 0.0
  %v2943 = vsel %vm153, %v2662, 0.0
  %v2944 = vadd.f32 %v2942, %v2943
  %v2945 = vsel %vm153, %v2778, 0.0
  %v2946 = vadd.f32 %v2944, %v2945
  %v2947 = vsel %vm153, %v2894, 0.0
  %v2948 = vadd.f32 %v2946, %v2947
  %v2949 = vsel %vm153, %v2548, 0.0
  %v2950 = vsel %vm153, %v2664, 0.0
  %v2951 = vadd.f32 %v2949, %v2950
  %v2952 = vsel %vm153, %v2780, 0.0
  %v2953 = vadd.f32 %v2951, %v2952
  %v2954 = vsel %vm153, %v2896, 0.0
  %v2955 = vadd.f32 %v2953, %v2954
  %v2956 = vsel %vm153, %v2551, 0.0
  %v2957 = vsel %vm153, %v2667, 0.0
  %v2958 = vadd.f32 %v2956, %v2957
  %v2959 = vsel %vm153, %v2783, 0.0
  %v2960 = vadd.f32 %v2958, %v2959
  %v2961 = vsel %vm153, %v2899, 0.0
  %v2962 = vadd.f32 %v2960, %v2961
  %v2963 = vsel %vm153, %v2553, 0.0
  %v2964 = vsel %vm153, %v2669, 0.0
  %v2965 = vadd.f32 %v2963, %v2964
  %v2966 = vsel %vm153, %v2785, 0.0
  %v2967 = vadd.f32 %v2965, %v2966
  %v2968 = vsel %vm153, %v2901, 0.0
  %v2969 = vadd.f32 %v2967, %v2968
  %v2970 = vsel %vm153, %v2556, 0.0
  %v2971 = vsel %vm153, %v2672, 0.0
  %v2972 = vadd.f32 %v2970, %v2971
  %v2973 = vsel %vm153, %v2788, 0.0
  %v2974 = vadd.f32 %v2972, %v2973
  %v2975 = vsel %vm153, %v2904, 0.0
  %v2976 = vadd.f32 %v2974, %v2975
  %v2977 = vsel %vm153, %v2558, 0.0
  %v2978 = vsel %vm153, %v2674, 0.0
  %v2979 = vadd.f32 %v2977, %v2978
  %v2980 = vsel %vm153, %v2790, 0.0
  %v2981 = vadd.f32 %v2979, %v2980
  %v2982 = vsel %vm153, %v2906, 0.0
  %v2983 = vadd.f32 %v2981, %v2982
  %v2984 = vsel %vm153, %v2561, 0.0
  %v2985 = vsel %vm153, %v2677, 0.0
  %v2986 = vadd.f32 %v2984, %v2985
  %v2987 = vsel %vm153, %v2793, 0.0
  %v2988 = vadd.f32 %v2986, %v2987
  %v2989 = vsel %vm153, %v2909, 0.0
  %v2990 = vadd.f32 %v2988, %v2989
  %v2991 = vsel %vm153, %v2563, 0.0
  %v2992 = vsel %vm153, %v2679, 0.0
  %v2993 = vadd.f32 %v2991, %v2992
  %v2994 = vsel %vm153, %v2795, 0.0
  %v2995 = vadd.f32 %v2993, %v2994
  %v2996 = vsel %vm153, %v2911, 0.0
  %v2997 = vadd.f32 %v2995, %v2996
  %v2998 = vsel %vm153, %v2566, 0.0
  %v2999 = vsel %vm153, %v2682, 0.0
  %v3000 = vadd.f32 %v2998, %v2999
  %v3001 = vsel %vm153, %v2798, 0.0
  %v3002 = vadd.f32 %v3000, %v3001
  %v3003 = vsel %vm153, %v2914, 0.0
  %v3004 = vadd.f32 %v3002, %v3003
  %v3005 = vsel %vm153, %v2568, 0.0
  %v3006 = vsel %vm153, %v2684, 0.0
  %v3007 = vadd.f32 %v3005, %v3006
  %v3008 = vsel %vm153, %v2800, 0.0
  %v3009 = vadd.f32 %v3007, %v3008
  %v3010 = vsel %vm153, %v2916, 0.0
  %v3011 = vadd.f32 %v3009, %v3010
  %v3012 = vsel %vm153, %v2571, 0.0
  %v3013 = vsel %vm153, %v2687, 0.0
  %v3014 = vadd.f32 %v3012, %v3013
  %v3015 = vsel %vm153, %v2803, 0.0
  %v3016 = vadd.f32 %v3014, %v3015
  %v3017 = vsel %vm153, %v2919, 0.0
  %v3018 = vadd.f32 %v3016, %v3017
  %v3019 = vsel %vm153, %v2573, 0.0
  %v3020 = vsel %vm153, %v2689, 0.0
  %v3021 = vadd.f32 %v3019, %v3020
  %v3022 = vsel %vm153, %v2805, 0.0
  %v3023 = vadd.f32 %v3021, %v3022
  %v3024 = vsel %vm153, %v2921, 0.0
  %v3025 = vadd.f32 %v3023, %v3024
  %v3026 = vsel %vm153, %v2576, 0.0
  %v3027 = vsel %vm153, %v2692, 0.0
  %v3028 = vadd.f32 %v3026, %v3027
  %v3029 = vsel %vm153, %v2808, 0.0
  %v3030 = vadd.f32 %v3028, %v3029
  %v3031 = vsel %vm153, %v2924, 0.0
  %v3032 = vadd.f32 %v3030, %v3031
  %v3033 = vsel %vm153, %v2578, 0.0
  %v3034 = vsel %vm153, %v2694, 0.0
  %v3035 = vadd.f32 %v3033, %v3034
  %v3036 = vsel %vm153, %v2810, 0.0
  %v3037 = vadd.f32 %v3035, %v3036
  %v3038 = vsel %vm153, %v2926, 0.0
  %v3039 = vadd.f32 %v3037, %v3038
  %v3040 = vld [vmem:[%s3] sm:$0x1]
  %v3042 = vperm.slane %v3040, 0
  %v3044 = vadd.f32 %v2934, %v3042
  %v3045 = vadd.f32 %v2941, %v3042
  %v3046 = vadd.f32 %v2948, %v3042
  %v3047 = vadd.f32 %v2955, %v3042
  %v3048 = vadd.f32 %v2962, %v3042
  %v3049 = vadd.f32 %v2969, %v3042
  %v3050 = vadd.f32 %v2976, %v3042
  %v3051 = vadd.f32 %v2983, %v3042
  %v3052 = vadd.f32 %v2990, %v3042
  %v3053 = vadd.f32 %v2997, %v3042
  %v3054 = vadd.f32 %v3004, %v3042
  %v3055 = vadd.f32 %v3011, %v3042
  %v3056 = vadd.f32 %v3018, %v3042
  %v3057 = vadd.f32 %v3025, %v3042
  %v3058 = vadd.f32 %v3032, %v3042
  %v3059 = vadd.f32 %v3039, %v3042
  %3060 = vst.msk [vmem:[%s5] sm:$0xff] %vm153, %v3044
  %3061 = vst.msk [vmem:[%s5 + $0x8] sm:$0xff] %vm153, %v3045
  %3062 = vst.msk [vmem:[%s5 + $0x10] sm:$0xff] %vm153, %v3046
  %3063 = vst.msk [vmem:[%s5 + $0x18] sm:$0xff] %vm153, %v3047
  %3064 = vst.msk [vmem:[%s5 + $0x20] sm:$0xff] %vm153, %v3048
  %3065 = vst.msk [vmem:[%s5 + $0x28] sm:$0xff] %vm153, %v3049
  %3066 = vst.msk [vmem:[%s5 + $0x30] sm:$0xff] %vm153, %v3050
  %3067 = vst.msk [vmem:[%s5 + $0x38] sm:$0xff] %vm153, %v3051
  %3068 = vst.msk [vmem:[%s5 + $0x40] sm:$0xff] %vm153, %v3052
  %3069 = vst.msk [vmem:[%s5 + $0x48] sm:$0xff] %vm153, %v3053
  %3070 = vst.msk [vmem:[%s5 + $0x50] sm:$0xff] %vm153, %v3054
  %3071 = vst.msk [vmem:[%s5 + $0x58] sm:$0xff] %vm153, %v3055
  %3072 = vst.msk [vmem:[%s5 + $0x60] sm:$0xff] %vm153, %v3056
  %3073 = vst.msk [vmem:[%s5 + $0x68] sm:$0xff] %vm153, %v3057
  %3074 = vst.msk [vmem:[%s5 + $0x70] sm:$0xff] %vm153, %v3058
  %3075 = vst.msk [vmem:[%s5 + $0x78] sm:$0xff] %vm153, %v3059
  // Predicated region
  $region22: #{tpu_custom_call.1} parent=0 // pred_check
    _
  $region23: #{tpu_custom_call.1} parent=0 // pred_check_branch
    %3077 = sbr.rel (0) target = $region25
  $region24: #{tpu_custom_call.1} parent=0 // pred_region
    _
  $region25: #{tpu_custom_call.1} parent=0 // pred_fallthru
    _
  // Predicated region
  $region26: #{tpu_custom_call.1} parent=0 // pred_check
    _
  $region27: #{tpu_custom_call.1} parent=0 // pred_check_branch
    %3079 = sbr.rel (0) target = $region29
  $region28: #{tpu_custom_call.1} parent=0 // pred_region
    _
  $region29: #{tpu_custom_call.1} parent=0 // pred_fallthru
    _

</llo_original>
